<compile_context>
chip_gen: v6e
topology: v6e:2x2x1
jax: 0.10.0
libtpu: 0.0.40
codegen_flags: <defaults>
</compile_context>

<pallas_src>
import jax
import jax.numpy as jnp
import numpy as np
from jax.experimental import pallas as pl
from jax.experimental.pallas import tpu as pltpu

BN_EPS = 1e-5
_VMEM_LIMIT = 32 * 1024 * 1024   # per-step working sets here are KBs; safe on all gens.


# ------------------------------ kernel factories ----------------------------- #

def _make_pool_conv_kernel(nb, H, W, Cin, Cout):
    """Fused 2x2 maxpool -> zero-pad -> 3x3 conv (banded matmul) -> bias -> BN stats."""
    Kp = (W + 2) * Cin        # padded-row lane width per image (conv K contribution)
    L = W * Cout              # output lane width per image

    def kernel(x_ref, w_ref, b_ref, y_ref, s1_ref, s2_ref, slab_ref):
        # x_ref   : (nb*2H, 2W*Cin) raw pre-pool rows for nb images (f32)
        # w_ref   : (3, nb*Kp, nb*L) block-diagonal banded conv weights (bf16)
        # b_ref   : (1, nb*L)        bias replicated over (image, w) (f32)
        # y_ref   : (H, nb*L)        conv1 + bias output (bf16)
        # s1/s2   : (1, nb*L)        per-group sum / sum-of-squares over rows (f32)
        # slab_ref: (H+2, nb*Kp)     zero-padded pooled activations (bf16 scratch)
        slab_ref[...] = jnp.zeros(slab_ref.shape, slab_ref.dtype)
        for i in range(nb):
            # 2x2 max pool: rows via stride-2 ref loads, columns via static lane slices.
            top = x_ref[pl.ds(2 * H * i, H, 2), :]      # even input rows   (H, 2W*Cin)
            bot = x_ref[pl.ds(2 * H * i + 1, H, 2), :]  # odd input rows
            rowmax = jnp.maximum(top, bot)
            cols = [jnp.maximum(rowmax[:, (2 * q) * Cin:(2 * q + 1) * Cin],
                                rowmax[:, (2 * q + 1) * Cin:(2 * q + 2) * Cin])
                    for q in range(W)]
            pooled = jnp.concatenate(cols, axis=1)      # (H, W*Cin)
            # Single bf16 cast per element; halo rows/cols stay exactly zero.
            slab_ref[pl.ds(1, H), pl.ds(i * Kp + Cin, W * Cin)] = (
                pooled.astype(slab_ref.dtype))
        # 3 MXU matmuls; the 3x3 taps are folded into the banded weight / K dim.
        acc = jnp.zeros((H, nb * L), jnp.float32)
        for dy in range(3):
            acc = acc + jnp.dot(slab_ref[pl.ds(dy, H), :], w_ref[dy],
                                preferred_element_type=jnp.float32)
        acc = acc + b_ref[...]
        y_ref[...] = acc.astype(y_ref.dtype)
        # Partial BatchNorm statistics (E[x^2]-E[x]^2 finish in the wrapper; f32).
        s1_ref[...] = jnp.sum(acc, axis=0, keepdims=True)
        s2_ref[...] = jnp.sum(acc * acc, axis=0, keepdims=True)

    return kernel


def _make_bn_conv_kernel(nb, H, W, Cin, Cout):
    """Fused BN-apply -> ReLU -> zero-pad -> 3x3 conv (banded matmul) -> bias -> BN stats."""
    Kp = (W + 2) * Cin
    Lin = W * Cin
    L = W * Cout

    def kernel(y_ref, sc_ref, sh_ref, w_ref, b_ref, o_ref, s1_ref, s2_ref, slab_ref):
        # y_ref  : (H, nb*Lin) previous conv pre-BN output (bf16)
        # sc/sh  : (1, nb*Lin) precomputed BN scale / shift, tiled over (image, w) (f32)
        slab_ref[...] = jnp.zeros(slab_ref.shape, slab_ref.dtype)
        act = jnp.maximum(
            y_ref[...].astype(jnp.float32) * sc_ref[...] + sh_ref[...], 0.0)
        for i in range(nb):
            # Only the interior is written; pad columns/rows stay exactly 0.
            slab_ref[pl.ds(1, H), pl.ds(i * Kp + Cin, Lin)] = (
                act[:, i * Lin:(i + 1) * Lin].astype(slab_ref.dtype))
        acc = jnp.zeros((H, nb * L), jnp.float32)
        for dy in range(3):
            acc = acc + jnp.dot(slab_ref[pl.ds(dy, H), :], w_ref[dy],
                                preferred_element_type=jnp.float32)
        acc = acc + b_ref[...]
        o_ref[...] = acc.astype(o_ref.dtype)
        s1_ref[...] = jnp.sum(acc, axis=0, keepdims=True)
        s2_ref[...] = jnp.sum(acc * acc, axis=0, keepdims=True)

    return kernel


def _bn_relu_kernel(y_ref, sc_ref, sh_ref, o_ref):
    # Final BN2 apply + ReLU on lane-dense (H, nb*W*Cout) tiles.
    o_ref[...] = jnp.maximum(
        y_ref[...].astype(jnp.float32) * sc_ref[...] + sh_ref[...], 0.0
    ).astype(o_ref.dtype)


# ------------------------------ weight helpers ------------------------------- #

def _banded_conv_weights(w, width):
    # w: (Cout, Cin, 3, 3) PyTorch layout.
    # Returns T of shape (3, (width+2)*Cin, width*Cout) with
    #   T[dy][(q+dx)*Cin + ci, q*Cout + co] = w[co, ci, dy, dx]
    # so that  out[h, q*Cout+co] = sum_dy  xpad[h+dy, :] @ T[dy].
    c_out, c_in = w.shape[0], w.shape[1]
    mats = []
    for dy in range(3):
        t = jnp.zeros((width + 2, c_in, width, c_out), jnp.float32)
        for dx in range(3):
            band = jnp.eye(width + 2, width, k=-dx, dtype=jnp.float32)  # 1 @ [q+dx, q]
            t = t + jnp.einsum("pq,oi->piqo", band, w[:, :, dy, dx])
        mats.append(t.reshape((width + 2) * c_in, width * c_out))
    return jnp.stack(mats, axis=0)


def _block_diag_weights(t, nb):
    # (3, Kp, L) -> (3, nb*Kp, nb*L) block diagonal, one block per lane-stacked image.
    if nb == 1:
        return t
    d, k, l = t.shape
    eye = jnp.eye(nb, dtype=t.dtype)
    return jnp.einsum("ab,dkl->dakbl", eye, t).reshape(d, nb * k, nb * l)


def _images_per_block(n, lane_width):
    # Stack images along lanes until outputs reach >=128 lanes; must divide N.
    want = max(1, -(-128 // lane_width))
    for cand in range(min(n, want), 0, -1):
        if n % cand == 0:
            return cand
    return 1


def _finish_bn(ssum, ssq, gamma, beta, count, c_out):
    # Exact global (training-mode) BN stats from per-group partial sums.
    # NOTE: E[x^2]-E[x]^2 in f32; acceptable at these scales (see review).
    ch_sum = ssum.reshape(-1, c_out).sum(axis=0)
    ch_sq = ssq.reshape(-1, c_out).sum(axis=0)
    mean = ch_sum / count
    var = jnp.maximum(ch_sq / count - mean * mean, 0.0)
    scale = gamma * jax.lax.rsqrt(var + BN_EPS)
    shift = beta - mean * scale
    return scale, shift


# --------------------------------- forward ----------------------------------- #

@jax.jit
def down_forward(x_nchw, params):
    """Equivalent of Down(in_ch, out_ch).forward(x) with x in NCHW (train-mode BN)."""
    N, Cin, Hin, Win = x_nchw.shape
    assert Hin % 2 == 0 and Win % 2 == 0, "maxpool2x2 needs even spatial dims"
    H, W = Hin // 2, Win // 2
    Cout = params["w1"].shape[0]

    nb = _images_per_block(N, W * Cout)     # images stacked along lanes per grid step
    G = N // nb
    L = W * Cout
    Kp1 = (W + 2) * Cin
    Kp2 = (W + 2) * Cout

    # NCHW -> NHWC (one XLA copy, layout contract), then free reshapes only.
    x = jnp.transpose(x_nchw, (0, 2, 3, 1)).reshape(G, nb * Hin, Win * Cin)

    w1b = _block_diag_weights(_banded_conv_weights(params["w1"], W), nb).astype(jnp.bfloat16)
    w2b = _block_diag_weights(_banded_conv_weights(params["w2"], W), nb).astype(jnp.bfloat16)
    b1row = jnp.tile(params["b1"], nb * W).reshape(1, nb * L).astype(jnp.float32)
    b2row = jnp.tile(params["b2"], nb * W).reshape(1, nb * L).astype(jnp.float32)

    cp = pltpu.CompilerParams(dimension_semantics=("parallel",),
                              vmem_limit_bytes=_VMEM_LIMIT)
    act_spec = pl.BlockSpec((None, H, nb * L), lambda g: (g, 0, 0))
    stat_spec = pl.BlockSpec((None, 1, nb * L), lambda g: (g, 0, 0))
    row_spec = pl.BlockSpec((1, nb * L), lambda g: (0, 0))

    # Pass 1: fused maxpool + pad + conv1 + bias + partial BN1 stats.
    y1, s1, q1 = pl.pallas_call(
        _make_pool_conv_kernel(nb, H, W, Cin, Cout),
        grid=(G,),
        out_shape=(jax.ShapeDtypeStruct((G, H, nb * L), jnp.bfloat16),
                   jax.ShapeDtypeStruct((G, 1, nb * L), jnp.float32),
                   jax.ShapeDtypeStruct((G, 1, nb * L), jnp.float32)),
        in_specs=[pl.BlockSpec((None, nb * Hin, Win * Cin), lambda g: (g, 0, 0)),
                  pl.BlockSpec((3, nb * Kp1, nb * L), lambda g: (0, 0, 0)),
                  row_spec],
        out_specs=(act_spec, stat_spec, stat_spec),
        scratch_shapes=[pltpu.VMEM((H + 2, nb * Kp1), jnp.bfloat16)],
        compiler_params=cp,
    )(x, w1b, b1row)

    m = float(N * H * W)
    sc1, sh1 = _finish_bn(s1, q1, params["g1"], params["beta1"], m, Cout)
    sc1_row = jnp.tile(sc1, nb * W).reshape(1, nb * L)
    sh1_row = jnp.tile(sh1, nb * W).reshape(1, nb * L)

    # Pass 2: fused BN1 apply + ReLU + pad + conv2 + bias + partial BN2 stats.
    y2, s2, q2 = pl.pallas_call(
        _make_bn_conv_kernel(nb, H, W, Cout, Cout),
        grid=(G,),
        out_shape=(jax.ShapeDtypeStruct((G, H, nb * L), jnp.bfloat16),
                   jax.ShapeDtypeStruct((G, 1, nb * L), jnp.float32),
                   jax.ShapeDtypeStruct((G, 1, nb * L), jnp.float32)),
        in_specs=[act_spec, row_spec, row_spec,
                  pl.BlockSpec((3, nb * Kp2, nb * L), lambda g: (0, 0, 0)),
                  row_spec],
        out_specs=(act_spec, stat_spec, stat_spec),
        scratch_shapes=[pltpu.VMEM((H + 2, nb * Kp2), jnp.bfloat16)],
        compiler_params=cp,
    )(y1, sc1_row, sh1_row, w2b, b2row)

    sc2, sh2 = _finish_bn(s2, q2, params["g2"], params["beta2"], m, Cout)
    sc2_row = jnp.tile(sc2, nb * W).reshape(1, nb * L)
    sh2_row = jnp.tile(sh2, nb * W).reshape(1, nb * L)

    # Pass 3: BN2 apply + ReLU epilogue (lane-dense).
    out = pl.pallas_call(
        _bn_relu_kernel,
        grid=(G,),
        out_shape=jax.ShapeDtypeStruct((G, H, nb * L), jnp.float32),
        in_specs=[act_spec, row_spec, row_spec],
        out_specs=act_spec,
        compiler_params=cp,
    )(y2, sc2_row, sh2_row)

    # lanes are (image-in-group, w, cout): reshape + one final NCHW transpose.
    out = out.reshape(G, H, nb, W, Cout)
    return jnp.transpose(out, (0, 2, 4, 1, 3)).reshape(N, Cout, H, W)


# ------------------------------ Parameters ----------------------------------- #

def init_down_params(key, in_ch, out_ch):
    k1, k2, k3, k4 = jax.random.split(key, 4)
    return {
        "w1": 0.1 * jax.random.normal(k1, (out_ch, in_ch, 3, 3), jnp.float32),
        "b1": 0.1 * jax.random.normal(k2, (out_ch,), jnp.float32),
        "g1": jnp.ones((out_ch,), jnp.float32),           # BN default init
        "beta1": jnp.zeros((out_ch,), jnp.float32),
        "w2": 0.1 * jax.random.normal(k3, (out_ch, out_ch, 3, 3), jnp.float32),
        "b2": 0.1 * jax.random.normal(k4, (out_ch,), jnp.float32),
        "g2": jnp.ones((out_ch,), jnp.float32),
        "beta2": jnp.zeros((out_ch,), jnp.float32),
    }


# ------------------------------ Reference ------------------------------------ #

def down_reference(x_nchw, params):
    x = jnp.transpose(x_nchw, (0, 2, 3, 1))
    N, H, W, C = x.shape
    x = x.reshape(N, H // 2, 2, W // 2, 2, C).max(axis=(2, 4))

    def cbr(y, w, b, g, be):
        out = jax.lax.conv_general_dilated(
            y, jnp.transpose(w, (2, 3, 1, 0)), window_strides=(1, 1),
            padding="SAME", dimension_numbers=("NHWC", "HWIO", "NHWC")) + b
        mean = out.mean(axis=(0, 1, 2), keepdims=True)
        var = ((out - mean) ** 2).mean(axis=(0, 1, 2), keepdims=True)
        return jnp.maximum((out - mean) * jax.lax.rsqrt(var + BN_EPS) * g + be, 0.0)

    x = cbr(x, params["w1"], params["b1"], params["g1"], params["beta1"])
    x = cbr(x, params["w2"], params["b2"], params["g2"], params["beta2"])
    return jnp.transpose(x, (0, 3, 1, 2))


# --------------------------------- Main --------------------------------------- #

if __name__ == "__main__":
    key = jax.random.PRNGKey(0)
    kx, kp = jax.random.split(key)

    N, IN_CH, OUT_CH, S = 2, 4, 8, 16
    x = jax.random.normal(kx, (N, IN_CH, S, S), jnp.float32)   # NCHW like PyTorch
    params = init_down_params(kp, IN_CH, OUT_CH)

    out = jax.block_until_ready(down_forward(x, params))
    assert out.shape == (N, OUT_CH, S // 2, S // 2), out.shape

    ref = jax.block_until_ready(down_reference(x, params))
    # Tolerance reflects bf16 MXU inputs AND bf16 inter-layer activations
    # (all accumulation / BN statistics / normalization math stays f32).
    np.testing.assert_allclose(np.asarray(out), np.asarray(ref), rtol=4e-2, atol=4e-2)

    print("KERNEL_OK")
</pallas_src>

<mosaic_0001>
module attributes {stable_mosaic.version = 11 : i64} {
  func.func @kernel(%arg0: i32, %arg1: memref<1x32x64xf32, #tpu.memory_space<vmem>>, %arg2: memref<3x80x128xbf16, #tpu.memory_space<vmem>>, %arg3: memref<1x128xf32, #tpu.memory_space<vmem>>, %arg4: memref<1x8x128xbf16, #tpu.memory_space<vmem>>, %arg5: memref<1x1x128xf32, #tpu.memory_space<vmem>>, %arg6: memref<1x1x128xf32, #tpu.memory_space<vmem>>, %arg7: memref<10x80xbf16, #tpu.memory_space<vmem>>) attributes {dimension_semantics = [#tpu.dimension_semantics<parallel>], iteration_bounds = array<i64: 1>, scalar_prefetch = 0 : i64, scratch_operands = 1 : i64, tpu.core_type = #tpu.core_type<tc>, window_params = [{transform_indices = @transform_0, window_bounds = array<i64: 1, 32, 64>}, {pipeline_mode = #tpu.pipeline_mode<synchronous>, transform_indices = @transform_1, window_bounds = array<i64: 3, 80, 128>}, {pipeline_mode = #tpu.pipeline_mode<synchronous>, transform_indices = @transform_2, window_bounds = array<i64: 1, 128>}, {transform_indices = @transform_3, window_bounds = array<i64: 1, 8, 128>}, {transform_indices = @transform_4, window_bounds = array<i64: 1, 1, 128>}, {transform_indices = @transform_5, window_bounds = array<i64: 1, 1, 128>}]} {
    %cst = arith.constant 0.000000e+00 : bf16
    %0 = vector.broadcast %cst : bf16 to vector<10x80xbf16>
    %c0 = arith.constant 0 : index
    %c0_0 = arith.constant 0 : index
    %1 = vector.load %arg7[%c0, %c0_0] : memref<10x80xbf16, #tpu.memory_space<vmem>>, vector<10x80xbf16>
    tpu.vector_store %arg7[%c0, %c0_0], %0 {strides = array<i32>} : memref<10x80xbf16, #tpu.memory_space<vmem>>, vector<10x80xbf16>,
    %c0_1 = arith.constant 0 : index
    %c0_2 = arith.constant 0 : index
    %c0_3 = arith.constant 0 : index
    %2 = tpu.strided_load %arg1[%c0_1, %c0_2, %c0_3] {strides = array<i32: 1, 2, 1>} : memref<1x32x64xf32, #tpu.memory_space<vmem>>, vector<1x8x64xf32>
    %3 = vector.shape_cast %2 : vector<1x8x64xf32> to vector<8x64xf32>
    %c0_4 = arith.constant 0 : index
    %c1 = arith.constant 1 : index
    %c0_5 = arith.constant 0 : index
    %4 = tpu.strided_load %arg1[%c0_4, %c1, %c0_5] {strides = array<i32: 1, 2, 1>} : memref<1x32x64xf32, #tpu.memory_space<vmem>>, vector<1x8x64xf32>
    %5 = vector.shape_cast %4 : vector<1x8x64xf32> to vector<8x64xf32>
    %6 = arith.maximumf %3, %5 : vector<8x64xf32>
    %7 = vector.extract_strided_slice %6 {offsets = [0, 0], sizes = [8, 4], strides = [1, 1]} : vector<8x64xf32> to vector<8x4xf32>
    %8 = vector.extract_strided_slice %6 {offsets = [0, 4], sizes = [8, 4], strides = [1, 1]} : vector<8x64xf32> to vector<8x4xf32>
    %9 = arith.maximumf %7, %8 : vector<8x4xf32>
    %10 = vector.extract_strided_slice %6 {offsets = [0, 8], sizes = [8, 4], strides = [1, 1]} : vector<8x64xf32> to vector<8x4xf32>
    %11 = vector.extract_strided_slice %6 {offsets = [0, 12], sizes = [8, 4], strides = [1, 1]} : vector<8x64xf32> to vector<8x4xf32>
    %12 = arith.maximumf %10, %11 : vector<8x4xf32>
    %13 = vector.extract_strided_slice %6 {offsets = [0, 16], sizes = [8, 4], strides = [1, 1]} : vector<8x64xf32> to vector<8x4xf32>
    %14 = vector.extract_strided_slice %6 {offsets = [0, 20], sizes = [8, 4], strides = [1, 1]} : vector<8x64xf32> to vector<8x4xf32>
    %15 = arith.maximumf %13, %14 : vector<8x4xf32>
    %16 = vector.extract_strided_slice %6 {offsets = [0, 24], sizes = [8, 4], strides = [1, 1]} : vector<8x64xf32> to vector<8x4xf32>
    %17 = vector.extract_strided_slice %6 {offsets = [0, 28], sizes = [8, 4], strides = [1, 1]} : vector<8x64xf32> to vector<8x4xf32>
    %18 = arith.maximumf %16, %17 : vector<8x4xf32>
    %19 = vector.extract_strided_slice %6 {offsets = [0, 32], sizes = [8, 4], strides = [1, 1]} : vector<8x64xf32> to vector<8x4xf32>
    %20 = vector.extract_strided_slice %6 {offsets = [0, 36], sizes = [8, 4], strides = [1, 1]} : vector<8x64xf32> to vector<8x4xf32>
    %21 = arith.maximumf %19, %20 : vector<8x4xf32>
    %22 = vector.extract_strided_slice %6 {offsets = [0, 40], sizes = [8, 4], strides = [1, 1]} : vector<8x64xf32> to vector<8x4xf32>
    %23 = vector.extract_strided_slice %6 {offsets = [0, 44], sizes = [8, 4], strides = [1, 1]} : vector<8x64xf32> to vector<8x4xf32>
    %24 = arith.maximumf %22, %23 : vector<8x4xf32>
    %25 = vector.extract_strided_slice %6 {offsets = [0, 48], sizes = [8, 4], strides = [1, 1]} : vector<8x64xf32> to vector<8x4xf32>
    %26 = vector.extract_strided_slice %6 {offsets = [0, 52], sizes = [8, 4], strides = [1, 1]} : vector<8x64xf32> to vector<8x4xf32>
    %27 = arith.maximumf %25, %26 : vector<8x4xf32>
    %28 = vector.extract_strided_slice %6 {offsets = [0, 56], sizes = [8, 4], strides = [1, 1]} : vector<8x64xf32> to vector<8x4xf32>
    %29 = vector.extract_strided_slice %6 {offsets = [0, 60], sizes = [8, 4], strides = [1, 1]} : vector<8x64xf32> to vector<8x4xf32>
    %30 = arith.maximumf %28, %29 : vector<8x4xf32>
    %31 = tpu.concatenate %9, %12, %15, %18, %21, %24, %27, %30 in 1 : vector<8x4xf32>, vector<8x4xf32>, vector<8x4xf32>, vector<8x4xf32>, vector<8x4xf32>, vector<8x4xf32>, vector<8x4xf32>, vector<8x4xf32> -> vector<8x32xf32>
    %32 = arith.truncf %31 : vector<8x32xf32> to vector<8x32xbf16>
    %c1_6 = arith.constant 1 : index
    %c4 = arith.constant 4 : index
    %33 = vector.load %arg7[%c1_6, %c4] : memref<10x80xbf16, #tpu.memory_space<vmem>>, vector<8x32xbf16>
    tpu.vector_store %arg7[%c1_6, %c4], %32 {strides = array<i32>} : memref<10x80xbf16, #tpu.memory_space<vmem>>, vector<8x32xbf16>,
    %c0_7 = arith.constant 0 : index
    %c16 = arith.constant 16 : index
    %c0_8 = arith.constant 0 : index
    %34 = tpu.strided_load %arg1[%c0_7, %c16, %c0_8] {strides = array<i32: 1, 2, 1>} : memref<1x32x64xf32, #tpu.memory_space<vmem>>, vector<1x8x64xf32>
    %35 = vector.shape_cast %34 : vector<1x8x64xf32> to vector<8x64xf32>
    %c0_9 = arith.constant 0 : index
    %c17 = arith.constant 17 : index
    %c0_10 = arith.constant 0 : index
    %36 = tpu.strided_load %arg1[%c0_9, %c17, %c0_10] {strides = array<i32: 1, 2, 1>} : memref<1x32x64xf32, #tpu.memory_space<vmem>>, vector<1x8x64xf32>
    %37 = vector.shape_cast %36 : vector<1x8x64xf32> to vector<8x64xf32>
    %38 = arith.maximumf %35, %37 : vector<8x64xf32>
    %39 = vector.extract_strided_slice %38 {offsets = [0, 0], sizes = [8, 4], strides = [1, 1]} : vector<8x64xf32> to vector<8x4xf32>
    %40 = vector.extract_strided_slice %38 {offsets = [0, 4], sizes = [8, 4], strides = [1, 1]} : vector<8x64xf32> to vector<8x4xf32>
    %41 = arith.maximumf %39, %40 : vector<8x4xf32>
    %42 = vector.extract_strided_slice %38 {offsets = [0, 8], sizes = [8, 4], strides = [1, 1]} : vector<8x64xf32> to vector<8x4xf32>
    %43 = vector.extract_strided_slice %38 {offsets = [0, 12], sizes = [8, 4], strides = [1, 1]} : vector<8x64xf32> to vector<8x4xf32>
    %44 = arith.maximumf %42, %43 : vector<8x4xf32>
    %45 = vector.extract_strided_slice %38 {offsets = [0, 16], sizes = [8, 4], strides = [1, 1]} : vector<8x64xf32> to vector<8x4xf32>
    %46 = vector.extract_strided_slice %38 {offsets = [0, 20], sizes = [8, 4], strides = [1, 1]} : vector<8x64xf32> to vector<8x4xf32>
    %47 = arith.maximumf %45, %46 : vector<8x4xf32>
    %48 = vector.extract_strided_slice %38 {offsets = [0, 24], sizes = [8, 4], strides = [1, 1]} : vector<8x64xf32> to vector<8x4xf32>
    %49 = vector.extract_strided_slice %38 {offsets = [0, 28], sizes = [8, 4], strides = [1, 1]} : vector<8x64xf32> to vector<8x4xf32>
    %50 = arith.maximumf %48, %49 : vector<8x4xf32>
    %51 = vector.extract_strided_slice %38 {offsets = [0, 32], sizes = [8, 4], strides = [1, 1]} : vector<8x64xf32> to vector<8x4xf32>
    %52 = vector.extract_strided_slice %38 {offsets = [0, 36], sizes = [8, 4], strides = [1, 1]} : vector<8x64xf32> to vector<8x4xf32>
    %53 = arith.maximumf %51, %52 : vector<8x4xf32>
    %54 = vector.extract_strided_slice %38 {offsets = [0, 40], sizes = [8, 4], strides = [1, 1]} : vector<8x64xf32> to vector<8x4xf32>
    %55 = vector.extract_strided_slice %38 {offsets = [0, 44], sizes = [8, 4], strides = [1, 1]} : vector<8x64xf32> to vector<8x4xf32>
    %56 = arith.maximumf %54, %55 : vector<8x4xf32>
    %57 = vector.extract_strided_slice %38 {offsets = [0, 48], sizes = [8, 4], strides = [1, 1]} : vector<8x64xf32> to vector<8x4xf32>
    %58 = vector.extract_strided_slice %38 {offsets = [0, 52], sizes = [8, 4], strides = [1, 1]} : vector<8x64xf32> to vector<8x4xf32>
    %59 = arith.maximumf %57, %58 : vector<8x4xf32>
    %60 = vector.extract_strided_slice %38 {offsets = [0, 56], sizes = [8, 4], strides = [1, 1]} : vector<8x64xf32> to vector<8x4xf32>
    %61 = vector.extract_strided_slice %38 {offsets = [0, 60], sizes = [8, 4], strides = [1, 1]} : vector<8x64xf32> to vector<8x4xf32>
    %62 = arith.maximumf %60, %61 : vector<8x4xf32>
    %63 = tpu.concatenate %41, %44, %47, %50, %53, %56, %59, %62 in 1 : vector<8x4xf32>, vector<8x4xf32>, vector<8x4xf32>, vector<8x4xf32>, vector<8x4xf32>, vector<8x4xf32>, vector<8x4xf32>, vector<8x4xf32> -> vector<8x32xf32>
    %64 = arith.truncf %63 : vector<8x32xf32> to vector<8x32xbf16>
    %c1_11 = arith.constant 1 : index
    %c44 = arith.constant 44 : index
    %65 = vector.load %arg7[%c1_11, %c44] : memref<10x80xbf16, #tpu.memory_space<vmem>>, vector<8x32xbf16>
    tpu.vector_store %arg7[%c1_11, %c44], %64 {strides = array<i32>} : memref<10x80xbf16, #tpu.memory_space<vmem>>, vector<8x32xbf16>,
    %cst_12 = arith.constant 0.000000e+00 : f32
    %66 = vector.broadcast %cst_12 : f32 to vector<8x128xf32>
    %c0_13 = arith.constant 0 : index
    %c0_14 = arith.constant 0 : index
    %67 = vector.load %arg7[%c0_13, %c0_14] : memref<10x80xbf16, #tpu.memory_space<vmem>>, vector<8x80xbf16>
    %c0_15 = arith.constant 0 : index
    %c0_16 = arith.constant 0 : index
    %c0_17 = arith.constant 0 : index
    %68 = vector.load %arg2[%c0_15, %c0_16, %c0_17] : memref<3x80x128xbf16, #tpu.memory_space<vmem>>, vector<1x80x128xbf16>
    %69 = vector.shape_cast %68 : vector<1x80x128xbf16> to vector<80x128xbf16>
    %cst_18 = arith.constant dense<0.000000e+00> : vector<8x128xf32>
    %70 = tpu.matmul %67, %69, %cst_18 {dimension_numbers = #tpu.dot_dimension_numbers<[1], [0], [0], [1], [0, 0, 1, 1], [], []>} : vector<8x80xbf16>, vector<80x128xbf16>, vector<8x128xf32> -> vector<8x128xf32>
    %71 = arith.addf %66, %70 : vector<8x128xf32>
    %c1_19 = arith.constant 1 : index
    %c0_20 = arith.constant 0 : index
    %72 = vector.load %arg7[%c1_19, %c0_20] : memref<10x80xbf16, #tpu.memory_space<vmem>>, vector<8x80xbf16>
    %c1_21 = arith.constant 1 : index
    %c0_22 = arith.constant 0 : index
    %c0_23 = arith.constant 0 : index
    %73 = vector.load %arg2[%c1_21, %c0_22, %c0_23] : memref<3x80x128xbf16, #tpu.memory_space<vmem>>, vector<1x80x128xbf16>
    %74 = vector.shape_cast %73 : vector<1x80x128xbf16> to vector<80x128xbf16>
    %cst_24 = arith.constant dense<0.000000e+00> : vector<8x128xf32>
    %75 = tpu.matmul %72, %74, %cst_24 {dimension_numbers = #tpu.dot_dimension_numbers<[1], [0], [0], [1], [0, 0, 1, 1], [], []>} : vector<8x80xbf16>, vector<80x128xbf16>, vector<8x128xf32> -> vector<8x128xf32>
    %76 = arith.addf %71, %75 : vector<8x128xf32>
    %c2 = arith.constant 2 : index
    %c0_25 = arith.constant 0 : index
    %77 = vector.load %arg7[%c2, %c0_25] : memref<10x80xbf16, #tpu.memory_space<vmem>>, vector<8x80xbf16>
    %c2_26 = arith.constant 2 : index
    %c0_27 = arith.constant 0 : index
    %c0_28 = arith.constant 0 : index
    %78 = vector.load %arg2[%c2_26, %c0_27, %c0_28] : memref<3x80x128xbf16, #tpu.memory_space<vmem>>, vector<1x80x128xbf16>
    %79 = vector.shape_cast %78 : vector<1x80x128xbf16> to vector<80x128xbf16>
    %cst_29 = arith.constant dense<0.000000e+00> : vector<8x128xf32>
    %80 = tpu.matmul %77, %79, %cst_29 {dimension_numbers = #tpu.dot_dimension_numbers<[1], [0], [0], [1], [0, 0, 1, 1], [], []>} : vector<8x80xbf16>, vector<80x128xbf16>, vector<8x128xf32> -> vector<8x128xf32>
    %81 = arith.addf %76, %80 : vector<8x128xf32>
    %c0_30 = arith.constant 0 : index
    %c0_31 = arith.constant 0 : index
    %82 = vector.load %arg3[%c0_30, %c0_31] : memref<1x128xf32, #tpu.memory_space<vmem>>, vector<1x128xf32>
    %83 = vector.broadcast %82 : vector<1x128xf32> to vector<8x128xf32>
    %84 = arith.addf %81, %83 : vector<8x128xf32>
    %85 = arith.truncf %84 : vector<8x128xf32> to vector<8x128xbf16>
    %c0_32 = arith.constant 0 : index
    %c0_33 = arith.constant 0 : index
    %c0_34 = arith.constant 0 : index
    %86 = vector.load %arg4[%c0_32, %c0_33, %c0_34] : memref<1x8x128xbf16, #tpu.memory_space<vmem>>, vector<1x8x128xbf16>
    %87 = vector.shape_cast %86 : vector<1x8x128xbf16> to vector<8x128xbf16>
    %88 = vector.shape_cast %85 : vector<8x128xbf16> to vector<1x8x128xbf16>
    tpu.vector_store %arg4[%c0_32, %c0_33, %c0_34], %88 {strides = array<i32>} : memref<1x8x128xbf16, #tpu.memory_space<vmem>>, vector<1x8x128xbf16>,
    %cst_35 = arith.constant dense<0.000000e+00> : vector<128xf32>
    %89 = vector.multi_reduction <add>, %84, %cst_35 [0] : vector<8x128xf32> to vector<128xf32>
    %90 = vector.shape_cast %89 : vector<128xf32> to vector<1x128xf32>
    %c0_36 = arith.constant 0 : index
    %c0_37 = arith.constant 0 : index
    %c0_38 = arith.constant 0 : index
    %91 = vector.load %arg5[%c0_36, %c0_37, %c0_38] : memref<1x1x128xf32, #tpu.memory_space<vmem>>, vector<1x1x128xf32>
    %92 = vector.shape_cast %91 : vector<1x1x128xf32> to vector<1x128xf32>
    %93 = vector.shape_cast %90 : vector<1x128xf32> to vector<1x1x128xf32>
    tpu.vector_store %arg5[%c0_36, %c0_37, %c0_38], %93 {strides = array<i32>} : memref<1x1x128xf32, #tpu.memory_space<vmem>>, vector<1x1x128xf32>,
    %94 = arith.mulf %84, %84 : vector<8x128xf32>
    %cst_39 = arith.constant dense<0.000000e+00> : vector<128xf32>
    %95 = vector.multi_reduction <add>, %94, %cst_39 [0] : vector<8x128xf32> to vector<128xf32>
    %96 = vector.shape_cast %95 : vector<128xf32> to vector<1x128xf32>
    %c0_40 = arith.constant 0 : index
    %c0_41 = arith.constant 0 : index
    %c0_42 = arith.constant 0 : index
    %97 = vector.load %arg6[%c0_40, %c0_41, %c0_42] : memref<1x1x128xf32, #tpu.memory_space<vmem>>, vector<1x1x128xf32>
    %98 = vector.shape_cast %97 : vector<1x1x128xf32> to vector<1x128xf32>
    %99 = vector.shape_cast %96 : vector<1x128xf32> to vector<1x1x128xf32>
    tpu.vector_store %arg6[%c0_40, %c0_41, %c0_42], %99 {strides = array<i32>} : memref<1x1x128xf32, #tpu.memory_space<vmem>>, vector<1x1x128xf32>,
    return
  }
  func.func @transform_0(%arg0: i32) -> (i32, i32, i32) {
    %c0_i32 = arith.constant 0 : i32
    %c0_i32_0 = arith.constant 0 : i32
    %c0_i32_1 = arith.constant 0 : i32
    return %arg0, %c0_i32, %c0_i32_0 : i32, i32, i32
  }
  func.func @transform_1(%arg0: i32) -> (i32, i32, i32) {
    %c0_i32 = arith.constant 0 : i32
    %c0_i32_0 = arith.constant 0 : i32
    %c0_i32_1 = arith.constant 0 : i32
    %c0_i32_2 = arith.constant 0 : i32
    return %c0_i32, %c0_i32_0, %c0_i32_1 : i32, i32, i32
  }
  func.func @transform_2(%arg0: i32) -> (i32, i32) {
    %c0_i32 = arith.constant 0 : i32
    %c0_i32_0 = arith.constant 0 : i32
    %c0_i32_1 = arith.constant 0 : i32
    return %c0_i32, %c0_i32_0 : i32, i32
  }
  func.func @transform_3(%arg0: i32) -> (i32, i32, i32) {
    %c0_i32 = arith.constant 0 : i32
    %c0_i32_0 = arith.constant 0 : i32
    %c0_i32_1 = arith.constant 0 : i32
    return %arg0, %c0_i32, %c0_i32_0 : i32, i32, i32
  }
  func.func @transform_4(%arg0: i32) -> (i32, i32, i32) {
    %c0_i32 = arith.constant 0 : i32
    %c0_i32_0 = arith.constant 0 : i32
    %c0_i32_1 = arith.constant 0 : i32
    return %arg0, %c0_i32, %c0_i32_0 : i32, i32, i32
  }
  func.func @transform_5(%arg0: i32) -> (i32, i32, i32) {
    %c0_i32 = arith.constant 0 : i32
    %c0_i32_0 = arith.constant 0 : i32
    %c0_i32_1 = arith.constant 0 : i32
    return %arg0, %c0_i32, %c0_i32_0 : i32, i32, i32
  }
}

module attributes {stable_mosaic.version = 11 : i64} {
  func.func @_bn_relu_kernel(%arg0: i32, %arg1: memref<1x8x128xbf16, #tpu.memory_space<vmem>>, %arg2: memref<1x128xf32, #tpu.memory_space<vmem>>, %arg3: memref<1x128xf32, #tpu.memory_space<vmem>>, %arg4: memref<1x8x128xf32, #tpu.memory_space<vmem>>) attributes {dimension_semantics = [#tpu.dimension_semantics<parallel>], iteration_bounds = array<i64: 1>, scalar_prefetch = 0 : i64, scratch_operands = 0 : i64, tpu.core_type = #tpu.core_type<tc>, window_params = [{transform_indices = @transform_0, window_bounds = array<i64: 1, 8, 128>}, {pipeline_mode = #tpu.pipeline_mode<synchronous>, transform_indices = @transform_1, window_bounds = array<i64: 1, 128>}, {pipeline_mode = #tpu.pipeline_mode<synchronous>, transform_indices = @transform_2, window_bounds = array<i64: 1, 128>}, {transform_indices = @transform_3, window_bounds = array<i64: 1, 8, 128>}]} {
    %c0 = arith.constant 0 : index
    %c0_0 = arith.constant 0 : index
    %c0_1 = arith.constant 0 : index
    %0 = vector.load %arg1[%c0, %c0_0, %c0_1] : memref<1x8x128xbf16, #tpu.memory_space<vmem>>, vector<1x8x128xbf16>
    %1 = vector.shape_cast %0 : vector<1x8x128xbf16> to vector<8x128xbf16>
    %2 = arith.extf %1 : vector<8x128xbf16> to vector<8x128xf32>
    %c0_2 = arith.constant 0 : index
    %c0_3 = arith.constant 0 : index
    %3 = vector.load %arg2[%c0_2, %c0_3] : memref<1x128xf32, #tpu.memory_space<vmem>>, vector<1x128xf32>
    %4 = vector.broadcast %3 : vector<1x128xf32> to vector<8x128xf32>
    %5 = arith.mulf %2, %4 : vector<8x128xf32>
    %c0_4 = arith.constant 0 : index
    %c0_5 = arith.constant 0 : index
    %6 = vector.load %arg3[%c0_4, %c0_5] : memref<1x128xf32, #tpu.memory_space<vmem>>, vector<1x128xf32>
    %7 = vector.broadcast %6 : vector<1x128xf32> to vector<8x128xf32>
    %8 = arith.addf %5, %7 : vector<8x128xf32>
    %cst = arith.constant 0.000000e+00 : f32
    %9 = vector.broadcast %cst : f32 to vector<8x128xf32>
    %10 = arith.maximumf %8, %9 : vector<8x128xf32>
    %c0_6 = arith.constant 0 : index
    %c0_7 = arith.constant 0 : index
    %c0_8 = arith.constant 0 : index
    %11 = vector.load %arg4[%c0_6, %c0_7, %c0_8] : memref<1x8x128xf32, #tpu.memory_space<vmem>>, vector<1x8x128xf32>
    %12 = vector.shape_cast %11 : vector<1x8x128xf32> to vector<8x128xf32>
    %13 = vector.shape_cast %10 : vector<8x128xf32> to vector<1x8x128xf32>
    tpu.vector_store %arg4[%c0_6, %c0_7, %c0_8], %13 {strides = array<i32>} : memref<1x8x128xf32, #tpu.memory_space<vmem>>, vector<1x8x128xf32>,
    return
  }
  func.func @transform_0(%arg0: i32) -> (i32, i32, i32) {
    %c0_i32 = arith.constant 0 : i32
    %c0_i32_0 = arith.constant 0 : i32
    %c0_i32_1 = arith.constant 0 : i32
    return %arg0, %c0_i32, %c0_i32_0 : i32, i32, i32
  }
  func.func @transform_1(%arg0: i32) -> (i32, i32) {
    %c0_i32 = arith.constant 0 : i32
    %c0_i32_0 = arith.constant 0 : i32
    %c0_i32_1 = arith.constant 0 : i32
    return %c0_i32, %c0_i32_0 : i32, i32
  }
  func.func @transform_2(%arg0: i32) -> (i32, i32) {
    %c0_i32 = arith.constant 0 : i32
    %c0_i32_0 = arith.constant 0 : i32
    %c0_i32_1 = arith.constant 0 : i32
    return %c0_i32, %c0_i32_0 : i32, i32
  }
  func.func @transform_3(%arg0: i32) -> (i32, i32, i32) {
    %c0_i32 = arith.constant 0 : i32
    %c0_i32_0 = arith.constant 0 : i32
    %c0_i32_1 = arith.constant 0 : i32
    return %arg0, %c0_i32, %c0_i32_0 : i32, i32, i32
  }
}

module attributes {stable_mosaic.version = 11 : i64} {
  func.func @kernel(%arg0: i32, %arg1: memref<1x8x128xbf16, #tpu.memory_space<vmem>>, %arg2: memref<1x128xf32, #tpu.memory_space<vmem>>, %arg3: memref<1x128xf32, #tpu.memory_space<vmem>>, %arg4: memref<3x160x128xbf16, #tpu.memory_space<vmem>>, %arg5: memref<1x128xf32, #tpu.memory_space<vmem>>, %arg6: memref<1x8x128xbf16, #tpu.memory_space<vmem>>, %arg7: memref<1x1x128xf32, #tpu.memory_space<vmem>>, %arg8: memref<1x1x128xf32, #tpu.memory_space<vmem>>, %arg9: memref<10x160xbf16, #tpu.memory_space<vmem>>) attributes {dimension_semantics = [#tpu.dimension_semantics<parallel>], iteration_bounds = array<i64: 1>, scalar_prefetch = 0 : i64, scratch_operands = 1 : i64, tpu.core_type = #tpu.core_type<tc>, window_params = [{transform_indices = @transform_0, window_bounds = array<i64: 1, 8, 128>}, {pipeline_mode = #tpu.pipeline_mode<synchronous>, transform_indices = @transform_1, window_bounds = array<i64: 1, 128>}, {pipeline_mode = #tpu.pipeline_mode<synchronous>, transform_indices = @transform_2, window_bounds = array<i64: 1, 128>}, {pipeline_mode = #tpu.pipeline_mode<synchronous>, transform_indices = @transform_3, window_bounds = array<i64: 3, 160, 128>}, {pipeline_mode = #tpu.pipeline_mode<synchronous>, transform_indices = @transform_4, window_bounds = array<i64: 1, 128>}, {transform_indices = @transform_5, window_bounds = array<i64: 1, 8, 128>}, {transform_indices = @transform_6, window_bounds = array<i64: 1, 1, 128>}, {transform_indices = @transform_7, window_bounds = array<i64: 1, 1, 128>}]} {
    %cst = arith.constant 0.000000e+00 : bf16
    %0 = vector.broadcast %cst : bf16 to vector<10x160xbf16>
    %c0 = arith.constant 0 : index
    %c0_0 = arith.constant 0 : index
    %1 = vector.load %arg9[%c0, %c0_0] : memref<10x160xbf16, #tpu.memory_space<vmem>>, vector<10x160xbf16>
    tpu.vector_store %arg9[%c0, %c0_0], %0 {strides = array<i32>} : memref<10x160xbf16, #tpu.memory_space<vmem>>, vector<10x160xbf16>,
    %c0_1 = arith.constant 0 : index
    %c0_2 = arith.constant 0 : index
    %c0_3 = arith.constant 0 : index
    %2 = vector.load %arg1[%c0_1, %c0_2, %c0_3] : memref<1x8x128xbf16, #tpu.memory_space<vmem>>, vector<1x8x128xbf16>
    %3 = vector.shape_cast %2 : vector<1x8x128xbf16> to vector<8x128xbf16>
    %4 = arith.extf %3 : vector<8x128xbf16> to vector<8x128xf32>
    %c0_4 = arith.constant 0 : index
    %c0_5 = arith.constant 0 : index
    %5 = vector.load %arg2[%c0_4, %c0_5] : memref<1x128xf32, #tpu.memory_space<vmem>>, vector<1x128xf32>
    %6 = vector.broadcast %5 : vector<1x128xf32> to vector<8x128xf32>
    %7 = arith.mulf %4, %6 : vector<8x128xf32>
    %c0_6 = arith.constant 0 : index
    %c0_7 = arith.constant 0 : index
    %8 = vector.load %arg3[%c0_6, %c0_7] : memref<1x128xf32, #tpu.memory_space<vmem>>, vector<1x128xf32>
    %9 = vector.broadcast %8 : vector<1x128xf32> to vector<8x128xf32>
    %10 = arith.addf %7, %9 : vector<8x128xf32>
    %cst_8 = arith.constant 0.000000e+00 : f32
    %11 = vector.broadcast %cst_8 : f32 to vector<8x128xf32>
    %12 = arith.maximumf %10, %11 : vector<8x128xf32>
    %13 = vector.extract_strided_slice %12 {offsets = [0, 0], sizes = [8, 64], strides = [1, 1]} : vector<8x128xf32> to vector<8x64xf32>
    %14 = arith.truncf %13 : vector<8x64xf32> to vector<8x64xbf16>
    %c1 = arith.constant 1 : index
    %c8 = arith.constant 8 : index
    %15 = vector.load %arg9[%c1, %c8] : memref<10x160xbf16, #tpu.memory_space<vmem>>, vector<8x64xbf16>
    tpu.vector_store %arg9[%c1, %c8], %14 {strides = array<i32>} : memref<10x160xbf16, #tpu.memory_space<vmem>>, vector<8x64xbf16>,
    %16 = vector.extract_strided_slice %12 {offsets = [0, 64], sizes = [8, 64], strides = [1, 1]} : vector<8x128xf32> to vector<8x64xf32>
    %17 = arith.truncf %16 : vector<8x64xf32> to vector<8x64xbf16>
    %c1_9 = arith.constant 1 : index
    %c88 = arith.constant 88 : index
    %18 = vector.load %arg9[%c1_9, %c88] : memref<10x160xbf16, #tpu.memory_space<vmem>>, vector<8x64xbf16>
    tpu.vector_store %arg9[%c1_9, %c88], %17 {strides = array<i32>} : memref<10x160xbf16, #tpu.memory_space<vmem>>, vector<8x64xbf16>,
    %cst_10 = arith.constant 0.000000e+00 : f32
    %19 = vector.broadcast %cst_10 : f32 to vector<8x128xf32>
    %c0_11 = arith.constant 0 : index
    %c0_12 = arith.constant 0 : index
    %20 = vector.load %arg9[%c0_11, %c0_12] : memref<10x160xbf16, #tpu.memory_space<vmem>>, vector<8x160xbf16>
    %c0_13 = arith.constant 0 : index
    %c0_14 = arith.constant 0 : index
    %c0_15 = arith.constant 0 : index
    %21 = vector.load %arg4[%c0_13, %c0_14, %c0_15] : memref<3x160x128xbf16, #tpu.memory_space<vmem>>, vector<1x160x128xbf16>
    %22 = vector.shape_cast %21 : vector<1x160x128xbf16> to vector<160x128xbf16>
    %cst_16 = arith.constant dense<0.000000e+00> : vector<8x128xf32>
    %23 = tpu.matmul %20, %22, %cst_16 {dimension_numbers = #tpu.dot_dimension_numbers<[1], [0], [0], [1], [0, 0, 1, 1], [], []>} : vector<8x160xbf16>, vector<160x128xbf16>, vector<8x128xf32> -> vector<8x128xf32>
    %24 = arith.addf %19, %23 : vector<8x128xf32>
    %c1_17 = arith.constant 1 : index
    %c0_18 = arith.constant 0 : index
    %25 = vector.load %arg9[%c1_17, %c0_18] : memref<10x160xbf16, #tpu.memory_space<vmem>>, vector<8x160xbf16>
    %c1_19 = arith.constant 1 : index
    %c0_20 = arith.constant 0 : index
    %c0_21 = arith.constant 0 : index
    %26 = vector.load %arg4[%c1_19, %c0_20, %c0_21] : memref<3x160x128xbf16, #tpu.memory_space<vmem>>, vector<1x160x128xbf16>
    %27 = vector.shape_cast %26 : vector<1x160x128xbf16> to vector<160x128xbf16>
    %cst_22 = arith.constant dense<0.000000e+00> : vector<8x128xf32>
    %28 = tpu.matmul %25, %27, %cst_22 {dimension_numbers = #tpu.dot_dimension_numbers<[1], [0], [0], [1], [0, 0, 1, 1], [], []>} : vector<8x160xbf16>, vector<160x128xbf16>, vector<8x128xf32> -> vector<8x128xf32>
    %29 = arith.addf %24, %28 : vector<8x128xf32>
    %c2 = arith.constant 2 : index
    %c0_23 = arith.constant 0 : index
    %30 = vector.load %arg9[%c2, %c0_23] : memref<10x160xbf16, #tpu.memory_space<vmem>>, vector<8x160xbf16>
    %c2_24 = arith.constant 2 : index
    %c0_25 = arith.constant 0 : index
    %c0_26 = arith.constant 0 : index
    %31 = vector.load %arg4[%c2_24, %c0_25, %c0_26] : memref<3x160x128xbf16, #tpu.memory_space<vmem>>, vector<1x160x128xbf16>
    %32 = vector.shape_cast %31 : vector<1x160x128xbf16> to vector<160x128xbf16>
    %cst_27 = arith.constant dense<0.000000e+00> : vector<8x128xf32>
    %33 = tpu.matmul %30, %32, %cst_27 {dimension_numbers = #tpu.dot_dimension_numbers<[1], [0], [0], [1], [0, 0, 1, 1], [], []>} : vector<8x160xbf16>, vector<160x128xbf16>, vector<8x128xf32> -> vector<8x128xf32>
    %34 = arith.addf %29, %33 : vector<8x128xf32>
    %c0_28 = arith.constant 0 : index
    %c0_29 = arith.constant 0 : index
    %35 = vector.load %arg5[%c0_28, %c0_29] : memref<1x128xf32, #tpu.memory_space<vmem>>, vector<1x128xf32>
    %36 = vector.broadcast %35 : vector<1x128xf32> to vector<8x128xf32>
    %37 = arith.addf %34, %36 : vector<8x128xf32>
    %38 = arith.truncf %37 : vector<8x128xf32> to vector<8x128xbf16>
    %c0_30 = arith.constant 0 : index
    %c0_31 = arith.constant 0 : index
    %c0_32 = arith.constant 0 : index
    %39 = vector.load %arg6[%c0_30, %c0_31, %c0_32] : memref<1x8x128xbf16, #tpu.memory_space<vmem>>, vector<1x8x128xbf16>
    %40 = vector.shape_cast %39 : vector<1x8x128xbf16> to vector<8x128xbf16>
    %41 = vector.shape_cast %38 : vector<8x128xbf16> to vector<1x8x128xbf16>
    tpu.vector_store %arg6[%c0_30, %c0_31, %c0_32], %41 {strides = array<i32>} : memref<1x8x128xbf16, #tpu.memory_space<vmem>>, vector<1x8x128xbf16>,
    %cst_33 = arith.constant dense<0.000000e+00> : vector<128xf32>
    %42 = vector.multi_reduction <add>, %37, %cst_33 [0] : vector<8x128xf32> to vector<128xf32>
    %43 = vector.shape_cast %42 : vector<128xf32> to vector<1x128xf32>
    %c0_34 = arith.constant 0 : index
    %c0_35 = arith.constant 0 : index
    %c0_36 = arith.constant 0 : index
    %44 = vector.load %arg7[%c0_34, %c0_35, %c0_36] : memref<1x1x128xf32, #tpu.memory_space<vmem>>, vector<1x1x128xf32>
    %45 = vector.shape_cast %44 : vector<1x1x128xf32> to vector<1x128xf32>
    %46 = vector.shape_cast %43 : vector<1x128xf32> to vector<1x1x128xf32>
    tpu.vector_store %arg7[%c0_34, %c0_35, %c0_36], %46 {strides = array<i32>} : memref<1x1x128xf32, #tpu.memory_space<vmem>>, vector<1x1x128xf32>,
    %47 = arith.mulf %37, %37 : vector<8x128xf32>
    %cst_37 = arith.constant dense<0.000000e+00> : vector<128xf32>
    %48 = vector.multi_reduction <add>, %47, %cst_37 [0] : vector<8x128xf32> to vector<128xf32>
    %49 = vector.shape_cast %48 : vector<128xf32> to vector<1x128xf32>
    %c0_38 = arith.constant 0 : index
    %c0_39 = arith.constant 0 : index
    %c0_40 = arith.constant 0 : index
    %50 = vector.load %arg8[%c0_38, %c0_39, %c0_40] : memref<1x1x128xf32, #tpu.memory_space<vmem>>, vector<1x1x128xf32>
    %51 = vector.shape_cast %50 : vector<1x1x128xf32> to vector<1x128xf32>
    %52 = vector.shape_cast %49 : vector<1x128xf32> to vector<1x1x128xf32>
    tpu.vector_store %arg8[%c0_38, %c0_39, %c0_40], %52 {strides = array<i32>} : memref<1x1x128xf32, #tpu.memory_space<vmem>>, vector<1x1x128xf32>,
    return
  }
  func.func @transform_0(%arg0: i32) -> (i32, i32, i32) {
    %c0_i32 = arith.constant 0 : i32
    %c0_i32_0 = arith.constant 0 : i32
    %c0_i32_1 = arith.constant 0 : i32
    return %arg0, %c0_i32, %c0_i32_0 : i32, i32, i32
  }
  func.func @transform_1(%arg0: i32) -> (i32, i32) {
    %c0_i32 = arith.constant 0 : i32
    %c0_i32_0 = arith.constant 0 : i32
    %c0_i32_1 = arith.constant 0 : i32
    return %c0_i32, %c0_i32_0 : i32, i32
  }
  func.func @transform_2(%arg0: i32) -> (i32, i32) {
    %c0_i32 = arith.constant 0 : i32
    %c0_i32_0 = arith.constant 0 : i32
    %c0_i32_1 = arith.constant 0 : i32
    return %c0_i32, %c0_i32_0 : i32, i32
  }
  func.func @transform_3(%arg0: i32) -> (i32, i32, i32) {
    %c0_i32 = arith.constant 0 : i32
    %c0_i32_0 = arith.constant 0 : i32
    %c0_i32_1 = arith.constant 0 : i32
    %c0_i32_2 = arith.constant 0 : i32
    return %c0_i32, %c0_i32_0, %c0_i32_1 : i32, i32, i32
  }
  func.func @transform_4(%arg0: i32) -> (i32, i32) {
    %c0_i32 = arith.constant 0 : i32
    %c0_i32_0 = arith.constant 0 : i32
    %c0_i32_1 = arith.constant 0 : i32
    return %c0_i32, %c0_i32_0 : i32, i32
  }
  func.func @transform_5(%arg0: i32) -> (i32, i32, i32) {
    %c0_i32 = arith.constant 0 : i32
    %c0_i32_0 = arith.constant 0 : i32
    %c0_i32_1 = arith.constant 0 : i32
    return %arg0, %c0_i32, %c0_i32_0 : i32, i32, i32
  }
  func.func @transform_6(%arg0: i32) -> (i32, i32, i32) {
    %c0_i32 = arith.constant 0 : i32
    %c0_i32_0 = arith.constant 0 : i32
    %c0_i32_1 = arith.constant 0 : i32
    return %arg0, %c0_i32, %c0_i32_0 : i32, i32, i32
  }
  func.func @transform_7(%arg0: i32) -> (i32, i32, i32) {
    %c0_i32 = arith.constant 0 : i32
    %c0_i32_0 = arith.constant 0 : i32
    %c0_i32_1 = arith.constant 0 : i32
    return %arg0, %c0_i32, %c0_i32_0 : i32, i32, i32
  }
}

</mosaic_0001>

<llo_original>
// kernel: tile.33
$region0: #{tile.33}
  #allocation0 [shape = 's32[1]{0}', space=sflag, size = 0x4, scoped, tag = 'scoped memory for tile.33']
  %s0 = inlined_call_operand.vmem [shape: f32[8], index: 0, kind: input, shape index: {}]
  %s1 = inlined_call_operand.vmem [shape: f32[16,8], index: 1, kind: output, shape index: {}]
  // Predicated region
  $region2: #{tile.33} parent=0 // pred_check
    _
  $region3: #{tile.33} parent=0 // pred_check_branch
    %3 = sbr.rel (0) target = $region5
  $region4: #{tile.33} parent=0 // pred_region
    _
  $region5: #{tile.33} parent=0 // pred_fallthru
    _
  %v4 = vld [vmem:[%s0] ss:$0 sm:$0xff]
  %5 = vst [vmem:[%s1] sm:$0xff] %v4
  %s6 = scalar_lea.vmem %s1, 8
  %7 = vst [vmem:[%s6] sm:$0xff] %v4

// kernel: tile.34
$region0: #{tile.34}
  %s0 = inlined_call_operand.vmem [shape: f32[16,8], index: 0, kind: input, shape index: {}]
  %s1 = inlined_call_operand.vmem [shape: f32[1,128], index: 1, kind: output, shape index: {}]
  $region1: #{tile.34} parent=0
    #allocation0 [shape = 'u8[4096]{0}', space=vmem, size = 0x1000, scoped, tag = 'scoped mem for output reshape']
    %v2 = vld [vmem:[%s0] sm:$0x1]
    %vm3 = vcmask 64512
    %4 = vst.msk [vmem:[#allocation0] sm:$0x1] %vm3, %v2
    %s5 = scalar_lea.vmem %s0, 15
    %v6 = vld [vmem:[%s5] sm:$0x1]
    %7 = vrot.lane.b32.xlu0 %v6, 120
    %v8 = vpop.permute.xlu0 %7
    %vm9 = vcmask 1048512
    %10 = vst.msk [vmem:[#allocation0] sm:$0x1] %vm9, %v8
    %s11 = scalar_lea.vmem %s0, 14
    %v12 = vld [vmem:[%s11] sm:$0x1]
    %13 = vrot.lane.b32.xlu0 %v12, 112
    %v14 = vpop.permute.xlu0 %13
    %vm15 = vcmask 982912
    %16 = vst.msk [vmem:[#allocation0] sm:$0x1] %vm15, %v14
    %s17 = scalar_lea.vmem %s0, 13
    %v18 = vld [vmem:[%s17] sm:$0x1]
    %19 = vrot.lane.b32.xlu0 %v18, 104
    %v20 = vpop.permute.xlu0 %19
    %vm21 = vcmask 917312
    %22 = vst.msk [vmem:[#allocation0] sm:$0x1] %vm21, %v20
    %s23 = scalar_lea.vmem %s0, 12
    %v24 = vld [vmem:[%s23] sm:$0x1]
    %25 = vrot.lane.b32.xlu0 %v24, 96
    %v26 = vpop.permute.xlu0 %25
    %vm27 = vcmask 851712
    %28 = vst.msk [vmem:[#allocation0] sm:$0x1] %vm27, %v26
    %s29 = scalar_lea.vmem %s0, 11
    %v30 = vld [vmem:[%s29] sm:$0x1]
    %31 = vrot.lane.b32.xlu0 %v30, 88
    %v32 = vpop.permute.xlu0 %31
    %vm33 = vcmask 786112
    %34 = vst.msk [vmem:[#allocation0] sm:$0x1] %vm33, %v32
    %s35 = scalar_lea.vmem %s0, 10
    %v36 = vld [vmem:[%s35] sm:$0x1]
    %37 = vrot.lane.b32.xlu0 %v36, 80
    %v38 = vpop.permute.xlu0 %37
    %vm39 = vcmask 720512
    %40 = vst.msk [vmem:[#allocation0] sm:$0x1] %vm39, %v38
    %s41 = scalar_lea.vmem %s0, 9
    %v42 = vld [vmem:[%s41] sm:$0x1]
    %43 = vrot.lane.b32.xlu0 %v42, 72
    %v44 = vpop.permute.xlu0 %43
    %vm45 = vcmask 654912
    %46 = vst.msk [vmem:[#allocation0] sm:$0x1] %vm45, %v44
    %s47 = scalar_lea.vmem %s0, 8
    %v48 = vld [vmem:[%s47] sm:$0x1]
    %49 = vrot.lane.b32.xlu0 %v48, 64
    %v50 = vpop.permute.xlu0 %49
    %vm51 = vcmask 589312
    %52 = vst.msk [vmem:[#allocation0] sm:$0x1] %vm51, %v50
    %s53 = scalar_lea.vmem %s0, 7
    %v54 = vld [vmem:[%s53] sm:$0x1]
    %55 = vrot.lane.b32.xlu0 %v54, 56
    %v56 = vpop.permute.xlu0 %55
    %vm57 = vcmask 523712
    %58 = vst.msk [vmem:[#allocation0] sm:$0x1] %vm57, %v56
    %s59 = scalar_lea.vmem %s0, 6
    %v60 = vld [vmem:[%s59] sm:$0x1]
    %61 = vrot.lane.b32.xlu0 %v60, 48
    %v62 = vpop.permute.xlu0 %61
    %vm63 = vcmask 458112
    %64 = vst.msk [vmem:[#allocation0] sm:$0x1] %vm63, %v62
    %s65 = scalar_lea.vmem %s0, 5
    %v66 = vld [vmem:[%s65] sm:$0x1]
    %67 = vrot.lane.b32.xlu0 %v66, 40
    %v68 = vpop.permute.xlu0 %67
    %vm69 = vcmask 392512
    %70 = vst.msk [vmem:[#allocation0] sm:$0x1] %vm69, %v68
    %s71 = scalar_lea.vmem %s0, 4
    %v72 = vld [vmem:[%s71] sm:$0x1]
    %73 = vrot.lane.b32.xlu0 %v72, 32
    %v74 = vpop.permute.xlu0 %73
    %vm75 = vcmask 326912
    %76 = vst.msk [vmem:[#allocation0] sm:$0x1] %vm75, %v74
    %s77 = scalar_lea.vmem %s0, 3
    %v78 = vld [vmem:[%s77] sm:$0x1]
    %79 = vrot.lane.b32.xlu0 %v78, 24
    %v80 = vpop.permute.xlu0 %79
    %vm81 = vcmask 261312
    %82 = vst.msk [vmem:[#allocation0] sm:$0x1] %vm81, %v80
    %s83 = scalar_lea.vmem %s0, 2
    %v84 = vld [vmem:[%s83] sm:$0x1]
    %85 = vrot.lane.b32.xlu0 %v84, 16
    %v86 = vpop.permute.xlu0 %85
    %vm87 = vcmask 195712
    %88 = vst.msk [vmem:[#allocation0] sm:$0x1] %vm87, %v86
    %s89 = scalar_lea.vmem %s0, 1
    %v90 = vld [vmem:[%s89] sm:$0x1]
    %91 = vrot.lane.b32.xlu0 %v90, 8
    %v92 = vpop.permute.xlu0 %91
    %vm93 = vcmask 130112
    %94 = vst.msk [vmem:[#allocation0] sm:$0x1] %vm93, %v92
    %s96 = sshll.u32 1, 1
    %s97 = ssub.s32 %s96, 1
    %v99 = vld [vmem:[#allocation0] sm:%s97]
    %s100 = sshll.u32 1, 1
    %s101 = ssub.s32 %s100, 1
    %102 = vst [vmem:[%s1] sm:%s101] %v99

// kernel: down_forward.5
$region0: #{down_forward.5}
  #allocation0 [shape = 'u32[]', space=smem, size = 0x4, offset = 0x4, fixed_abs, tag = 'smem constant byte address 0x4 - core index']
  #allocation1 [shape = 'u32[144,128]{1,0:T(1,128)}', space=vmem, size = 0x12000, scoped, tag = 'internal scratch']
  %s0 = inlined_call_operand.vmem [shape: bf16[1,8,128], index: 0, kind: input, shape index: {}]
  %s1 = inlined_call_operand.vmem [shape: f32[1,128], index: 1, kind: input, shape index: {}]
  %s2 = inlined_call_operand.vmem [shape: f32[1,128], index: 2, kind: input, shape index: {}]
  %s3 = inlined_call_operand.vmem [shape: f32[1,8,128], index: 3, kind: output, shape index: {}]
  %s4 = sld [smem:[#allocation0]]
  $region22: #{down_forward.5} parent=0
    _
  %s6 = ssub.s32 1, %s4
  %s7 = scalar_select 0, %s6, %s4
  // Predicated region
  $region2: #{down_forward.5} parent=0 // pred_check
    _
  $region3: #{down_forward.5} parent=0 // pred_check_branch
    %9 = sbr.rel (0) target = $region5
  $region4: #{down_forward.5} parent=0 // pred_region
    _
  $region5: #{down_forward.5} parent=0 // pred_fallthru
    _
  // Predicated region
  $region6: #{down_forward.5} parent=0 // pred_check
    _
  $region7: #{down_forward.5} parent=0 // pred_check_branch
    %11 = sbr.rel (0) target = $region9
  $region8: #{down_forward.5} parent=0 // pred_region
    _
  $region9: #{down_forward.5} parent=0 // pred_fallthru
    _
  // Predicated region
  $region10: #{down_forward.5} parent=0 // pred_check
    _
  $region11: #{down_forward.5} parent=0 // pred_check_branch
    %13 = sbr.rel (0) target = $region13
  $region12: #{down_forward.5} parent=0 // pred_region
    _
  $region13: #{down_forward.5} parent=0 // pred_fallthru
    _
  %v14 = vld [vmem:[%s0] sm:$0xf]
  %v15 = vunpack.c.l.bf16 %v14
  %v16 = vld [vmem:[%s1] sm:$0x1]
  %v18 = vlaneseq
  %v19 = vshrl.u32 %v18, 7
  %v20 = vsub.s32 0, %v19
  %v21 = vrot.slane %v16, %v20
  %v23 = vmul.f32 %v15, %v21
  %v24 = vld [vmem:[%s2] sm:$0x1]
  %v26 = vlaneseq
  %v27 = vshrl.u32 %v26, 7
  %v28 = vsub.s32 0, %v27
  %v29 = vrot.slane %v24, %v28
  %v31 = vadd.f32 %v23, %v29
  %v32 = vmax.f32 %v31, 0.0
  %33 = vst [vmem:[%s3] sm:$0xff] %v32
  // Predicated region
  $region14: #{down_forward.5} parent=0 // pred_check
    _
  $region15: #{down_forward.5} parent=0 // pred_check_branch
    %35 = sbr.rel (0) target = $region17
  $region16: #{down_forward.5} parent=0 // pred_region
    _
  $region17: #{down_forward.5} parent=0 // pred_fallthru
    _
  // Predicated region
  $region18: #{down_forward.5} parent=0 // pred_check
    _
  $region19: #{down_forward.5} parent=0 // pred_check_branch
    %37 = sbr.rel (0) target = $region21
  $region20: #{down_forward.5} parent=0 // pred_region
    _
  $region21: #{down_forward.5} parent=0 // pred_fallthru
    _

// kernel: down_forward.3
$region0: #{down_forward.3}
  #allocation0 [shape = 'u32[]', space=smem, size = 0x4, offset = 0x4, fixed_abs, tag = 'smem constant byte address 0x4 - core index']
  #allocation1 [shape = 'u32[144,128]{1,0:T(1,128)}', space=vmem, size = 0x12000, scoped, tag = 'internal scratch']
  #allocation2 [shape = 'bf16[10,80]{1,0:T(8,128)(2,1)}', space=vmem, size = 0x1000, scoped, tag = 'scratch operand']
  %s0 = inlined_call_operand.vmem [shape: f32[1,32,64], index: 0, kind: input, shape index: {}]
  %s1 = inlined_call_operand.vmem [shape: bf16[3,80,128], index: 1, kind: input, shape index: {}]
  %s2 = inlined_call_operand.vmem [shape: f32[1,128], index: 2, kind: input, shape index: {}]
  %s3 = inlined_call_operand.vmem [shape: bf16[1,8,128], index: 3, kind: output, shape index: {0}]
  %s4 = inlined_call_operand.vmem [shape: f32[1,1,128], index: 4, kind: output, shape index: {1}]
  %s5 = inlined_call_operand.vmem [shape: f32[1,1,128], index: 5, kind: output, shape index: {2}]
  %6 = xla_tuple %s3, %s4, %s5
  %s7 = sld [smem:[#allocation0]]
  $region38: #{down_forward.3} parent=0
    _
  %s9 = ssub.s32 1, %s7
  %s10 = scalar_select 0, %s9, %s7
  // Predicated region
  $region2: #{down_forward.3} parent=0 // pred_check
    _
  $region3: #{down_forward.3} parent=0 // pred_check_branch
    %12 = sbr.rel (0) target = $region5
  $region4: #{down_forward.3} parent=0 // pred_region
    _
  $region5: #{down_forward.3} parent=0 // pred_fallthru
    _
  // Predicated region
  $region6: #{down_forward.3} parent=0 // pred_check
    _
  $region7: #{down_forward.3} parent=0 // pred_check_branch
    %14 = sbr.rel (0) target = $region9
  $region8: #{down_forward.3} parent=0 // pred_region
    _
  $region9: #{down_forward.3} parent=0 // pred_fallthru
    _
  // Predicated region
  $region10: #{down_forward.3} parent=0 // pred_check
    _
  $region11: #{down_forward.3} parent=0 // pred_check_branch
    %16 = sbr.rel (0) target = $region13
  $region12: #{down_forward.3} parent=0 // pred_region
    _
  $region13: #{down_forward.3} parent=0 // pred_fallthru
    _
  %vm18 = vcmask 650240
  %19 = vst.msk [vmem:[#allocation2] sm:$0xf] %vm18, 0
  %vm20 = vcmask 647168
  %21 = vst.msk [vmem:[#allocation2 + $0x4] sm:$0x1] %vm20, 0
  %v22 = vld [vmem:[%s0] ss:$2 sm:$0xff]
  %s23 = scalar_lea.vmem %s0, 1
  %v24 = vld [vmem:[%s23] ss:$2 sm:$0xff]
  %v25 = vmax.f32 %v22, %v24
  %27 = vrot.lane.b32.xlu0 %v25, 124
  %v28 = vpop.permute.xlu0 %27
  %v30 = vmax.f32 %v25, %v28
  %32 = vrot.lane.b32.xlu0 %v30, 124
  %v33 = vpop.permute.xlu0 %32
  %35 = vrot.lane.b32.xlu0 %v30, 120
  %v36 = vpop.permute.xlu0 %35
  %38 = vrot.lane.b32.xlu0 %v30, 116
  %v39 = vpop.permute.xlu0 %38
  %41 = vrot.lane.b32.xlu0 %v30, 112
  %v42 = vpop.permute.xlu0 %41
  %44 = vrot.lane.b32.xlu0 %v30, 108
  %v45 = vpop.permute.xlu0 %44
  %47 = vrot.lane.b32.xlu0 %v30, 104
  %v48 = vpop.permute.xlu0 %47
  %50 = vrot.lane.b32.xlu0 %v30, 100
  %v51 = vpop.permute.xlu0 %50
  %vm53 = vcmask 31744
  %v54 = vsel %vm53, %v30, %v33
  %vm55 = vcmask 64512
  %v56 = vsel %vm55, %v54, %v36
  %vm57 = vcmask 97280
  %v58 = vsel %vm57, %v56, %v39
  %vm59 = vcmask 130048
  %v60 = vsel %vm59, %v58, %v42
  %vm61 = vcmask 162816
  %v62 = vsel %vm61, %v60, %v45
  %vm63 = vcmask 195584
  %v64 = vsel %vm63, %v62, %v48
  %vm65 = vcmask 228352
  %v66 = vsel %vm65, %v64, %v51
  %v67 = vpack.c.bf16 %v66, %v66
  %v69 = vunpack.c.l.b16 %v67
  %v70 = vpack.c.b16 %v69, %v69
  %v72 = vshrl.u32 %v70, 16
  %v74 = vrot.slane %v72, 7
  %v75 = vshll.u32 %v70, 16
  %v77 = vor.u32 %v74, %v75
  %v78 = vrot.slane %v74, 4
  %79 = vrot.lane.b32.xlu0 %v77, 4
  %v80 = vpop.permute.xlu0 %79
  %81 = vrot.lane.b32.xlu0 %v78, 4
  %v82 = vpop.permute.xlu0 %81
  %vm85 = vcmask 289824
  %vm86 = vsmask.f32 7938
  %vm87 = vmand %vm85, %vm86
  %v88 = vld [vmem:[#allocation2] sm:$0xf]
  %v89 = vsel %vm87, %v80, %v88
  %90 = vst [vmem:[#allocation2] sm:$0xf] %v89
  %vm91 = vcmask 286752
  %vm92 = vsmask.f32 256
  %vm93 = vmand %vm91, %vm92
  %v94 = vld [vmem:[#allocation2 + $0x4] sm:$0x1]
  %v95 = vsel %vm93, %v82, %v94
  %96 = vst [vmem:[#allocation2 + $0x4] sm:$0x1] %v95
  %s97 = scalar_lea.vmem %s0, 16
  %v98 = vld [vmem:[%s97] ss:$2 sm:$0xff]
  %s99 = scalar_lea.vmem %s0, 17
  %v100 = vld [vmem:[%s99] ss:$2 sm:$0xff]
  %v101 = vmax.f32 %v98, %v100
  %103 = vrot.lane.b32.xlu0 %v101, 124
  %v104 = vpop.permute.xlu0 %103
  %v106 = vmax.f32 %v101, %v104
  %108 = vrot.lane.b32.xlu0 %v106, 124
  %v109 = vpop.permute.xlu0 %108
  %111 = vrot.lane.b32.xlu0 %v106, 120
  %v112 = vpop.permute.xlu0 %111
  %114 = vrot.lane.b32.xlu0 %v106, 116
  %v115 = vpop.permute.xlu0 %114
  %117 = vrot.lane.b32.xlu0 %v106, 112
  %v118 = vpop.permute.xlu0 %117
  %120 = vrot.lane.b32.xlu0 %v106, 108
  %v121 = vpop.permute.xlu0 %120
  %123 = vrot.lane.b32.xlu0 %v106, 104
  %v124 = vpop.permute.xlu0 %123
  %126 = vrot.lane.b32.xlu0 %v106, 100
  %v127 = vpop.permute.xlu0 %126
  %v129 = vsel %vm53, %v106, %v109
  %v130 = vsel %vm55, %v129, %v112
  %v131 = vsel %vm57, %v130, %v115
  %v132 = vsel %vm59, %v131, %v118
  %v133 = vsel %vm61, %v132, %v121
  %v134 = vsel %vm63, %v133, %v124
  %v135 = vsel %vm65, %v134, %v127
  %v136 = vpack.c.bf16 %v135, %v135
  %v138 = vunpack.c.l.b16 %v136
  %v139 = vpack.c.b16 %v138, %v138
  %v141 = vshrl.u32 %v139, 16
  %v143 = vrot.slane %v141, 7
  %v144 = vshll.u32 %v139, 16
  %v146 = vor.u32 %v143, %v144
  %v147 = vrot.slane %v143, 4
  %148 = vrot.lane.b32.xlu0 %v146, 44
  %v149 = vpop.permute.xlu0 %148
  %150 = vrot.lane.b32.xlu0 %v147, 44
  %v151 = vpop.permute.xlu0 %150
  %vm154 = vcmask 617824
  %vm155 = vmand %vm154, %vm86
  %v156 = vld [vmem:[#allocation2] sm:$0xf]
  %v157 = vsel %vm155, %v149, %v156
  %158 = vst [vmem:[#allocation2] sm:$0xf] %v157
  %vm159 = vcmask 614752
  %vm160 = vmand %vm159, %vm92
  %v161 = vld [vmem:[#allocation2 + $0x4] sm:$0x1]
  %v162 = vsel %vm160, %v151, %v161
  %163 = vst [vmem:[#allocation2 + $0x4] sm:$0x1] %v162
  %v164 = vld [vmem:[#allocation2] sm:$0xf]
  %v165 = vld [vmem:[%s1] sm:$0xf]
  %v166 = vld [vmem:[%s1 + $0x4] sm:$0xf]
  %v167 = vld [vmem:[%s1 + $0x8] sm:$0xf]
  %v168 = vld [vmem:[%s1 + $0xc] sm:$0xf]
  %v169 = vld [vmem:[%s1 + $0x10] sm:$0xf]
  %v170 = vld [vmem:[%s1 + $0x14] sm:$0xf]
  %v171 = vld [vmem:[%s1 + $0x18] sm:$0xf]
  %v172 = vld [vmem:[%s1 + $0x1c] sm:$0xf]
  %v173 = vld [vmem:[%s1 + $0x20] sm:$0xf]
  %v174 = vld [vmem:[%s1 + $0x24] sm:$0xf]
  %v175 = vld [vmem:[#allocation2 + $0x4] sm:$0x1]
  %s176 = scalar_lea.vmem %s1, 40
  %v177 = vld [vmem:[%s176] sm:$0xf]
  %v178 = vld [vmem:[%s176 + $0x4] sm:$0xf]
  %v179 = vld [vmem:[%s176 + $0x8] sm:$0xf]
  %v180 = vld [vmem:[%s176 + $0xc] sm:$0xf]
  %v181 = vld [vmem:[%s176 + $0x10] sm:$0xf]
  %v182 = vld [vmem:[%s176 + $0x14] sm:$0xf]
  %v183 = vld [vmem:[%s176 + $0x18] sm:$0xf]
  %v184 = vld [vmem:[%s176 + $0x1c] sm:$0xf]
  %v185 = vld [vmem:[%s176 + $0x20] sm:$0xf]
  %v186 = vld [vmem:[%s176 + $0x24] sm:$0xf]
  %v189 = vunpack.c.l.b16 %v164
  %v190 = vunpack.c.l.b16 %v175
  %v191 = vpack.c.b16 %v190, %v189
  %v193 = vshrl.u32 %v191, 16
  %v195 = vshll.u32 %v191, 16
  %v197 = vrot.slane %v195, 1
  %v198 = vor.u32 %v193, %v197
  %v209 = vunpack.c.l.b16 %v177
  %v210 = vunpack.c.l.b16 %v178
  %v211 = vunpack.c.l.b16 %v179
  %v212 = vunpack.c.l.b16 %v180
  %v213 = vunpack.c.l.b16 %v181
  %v214 = vunpack.c.l.b16 %v182
  %v215 = vunpack.c.l.b16 %v183
  %v216 = vunpack.c.l.b16 %v184
  %v217 = vunpack.c.l.b16 %v185
  %v218 = vunpack.c.l.b16 %v186
  %v219 = vpack.c.b16 %v210, %v209
  %v220 = vpack.c.b16 %v212, %v211
  %v221 = vpack.c.b16 %v214, %v213
  %v222 = vpack.c.b16 %v216, %v215
  %v223 = vpack.c.b16 %v218, %v217
  %vm229 = vcmask 654336
  %v231 = vsel %vm229, %v198, 0
  %233 = vmatprep.subr.bf16.mxu0 0
  %234 = vmatpush1.bf16.msra.mxu0 0
  %235 = vmatprep.subr.bf16.mxu0 0
  %236 = vmatpush1.bf16.msra.mxu0 0
  %237 = vmatprep.subr.bf16.mxu0 0
  %238 = vmatpush1.bf16.msra.mxu0 0
  %239 = vmatprep.subr.bf16.mxu0 0
  %240 = vmatpush1.bf16.msra.mxu0 %v223
  %241 = vmatprep.subr.bf16.mxu0 0
  %242 = vmatpush1.bf16.msra.mxu0 %v222
  %243 = vmatprep.subr.bf16.mxu0 0
  %244 = vmatpush1.bf16.msra.mxu0 %v221
  %245 = vmatprep.subr.bf16.mxu0 0
  %246 = vmatpush1.bf16.msra.mxu0 %v220
  %247 = vmatprep.subr.bf16.mxu0 0
  %248 = vmatpush1.bf16.msra.mxu0 %v219
  %249 = vmatprep.subr.bf16.mxu0 0
  %250 = vmatpush2.bf16.msra.mxu0 0
  %251 = vmatprep.subr.bf16.mxu0 0
  %252 = vmatpush2.bf16.msra.mxu0 0
  %253 = vmatprep.subr.bf16.mxu0 0
  %254 = vmatpush2.bf16.msra.mxu0 0
  %255 = vmatprep.subr.bf16.mxu0 0
  %256 = vmatpush2.bf16.msra.mxu0 0
  %257 = vmatprep.subr.bf16.mxu0 0
  %258 = vmatpush2.bf16.msra.mxu0 0
  %259 = vmatprep.subr.bf16.mxu0 0
  %260 = vmatpush2.bf16.msra.mxu0 0
  %261 = vmatprep.subr.bf16.mxu0 0
  %262 = vmatpush2.bf16.msra.mxu0 0
  %263 = vmatprep.subr.bf16.mxu0 0
  %264 = vmatpush2.bf16.msra.mxu0 0
  %265 = vmatprep.mubr.bf16.mxu0 0
  %266 = vmatmul.mubr.bf16.gmra.mxu0 %v231
  %v267 = vpop.f32.mrf.mxu0
  %v268 = vadd.f32 0.0, %v267
  %v269 = vpop.f32.mrf.mxu0
  %v270 = vpop.f32.mrf.mxu0
  %v271 = vpop.f32.mrf.mxu0
  %272 = vdwg.mxu0
  %v283 = vunpack.c.l.b16 %v165
  %v284 = vunpack.c.l.b16 %v166
  %v285 = vunpack.c.l.b16 %v167
  %v286 = vunpack.c.l.b16 %v168
  %v287 = vunpack.c.l.b16 %v169
  %v288 = vunpack.c.l.b16 %v170
  %v289 = vunpack.c.l.b16 %v171
  %v290 = vunpack.c.l.b16 %v172
  %v291 = vunpack.c.l.b16 %v173
  %v292 = vunpack.c.l.b16 %v174
  %v293 = vpack.c.b16 %v284, %v283
  %v294 = vpack.c.b16 %v286, %v285
  %v295 = vpack.c.b16 %v288, %v287
  %v296 = vpack.c.b16 %v290, %v289
  %v297 = vpack.c.b16 %v292, %v291
  %v304 = vsel %vm229, %v164, 0
  %306 = vmatprep.subr.bf16.mxu0 0
  %307 = vmatpush1.bf16.msra.mxu0 0
  %308 = vmatprep.subr.bf16.mxu0 0
  %309 = vmatpush1.bf16.msra.mxu0 0
  %310 = vmatprep.subr.bf16.mxu0 0
  %311 = vmatpush1.bf16.msra.mxu0 0
  %312 = vmatprep.subr.bf16.mxu0 0
  %313 = vmatpush1.bf16.msra.mxu0 %v297
  %314 = vmatprep.subr.bf16.mxu0 0
  %315 = vmatpush1.bf16.msra.mxu0 %v296
  %316 = vmatprep.subr.bf16.mxu0 0
  %317 = vmatpush1.bf16.msra.mxu0 %v295
  %318 = vmatprep.subr.bf16.mxu0 0
  %319 = vmatpush1.bf16.msra.mxu0 %v294
  %320 = vmatprep.subr.bf16.mxu0 0
  %321 = vmatpush1.bf16.msra.mxu0 %v293
  %322 = vmatprep.subr.bf16.mxu0 0
  %323 = vmatpush2.bf16.msra.mxu0 0
  %324 = vmatprep.subr.bf16.mxu0 0
  %325 = vmatpush2.bf16.msra.mxu0 0
  %326 = vmatprep.subr.bf16.mxu0 0
  %327 = vmatpush2.bf16.msra.mxu0 0
  %328 = vmatprep.subr.bf16.mxu0 0
  %329 = vmatpush2.bf16.msra.mxu0 0
  %330 = vmatprep.subr.bf16.mxu0 0
  %331 = vmatpush2.bf16.msra.mxu0 0
  %332 = vmatprep.subr.bf16.mxu0 0
  %333 = vmatpush2.bf16.msra.mxu0 0
  %334 = vmatprep.subr.bf16.mxu0 0
  %335 = vmatpush2.bf16.msra.mxu0 0
  %336 = vmatprep.subr.bf16.mxu0 0
  %337 = vmatpush2.bf16.msra.mxu0 0
  %338 = vmatprep.mubr.bf16.mxu0 0
  %339 = vmatmul.mubr.bf16.gmra.mxu0 %v304
  %v340 = vpop.f32.mrf.mxu0
  %v341 = vadd.f32 %v268, %v340
  %v342 = vpop.f32.mrf.mxu0
  %v343 = vpop.f32.mrf.mxu0
  %v344 = vpop.f32.mrf.mxu0
  %345 = vdwg.mxu0
  %v346 = vld [vmem:[#allocation2] sm:$0xe]
  %s347 = scalar_lea.vmem %s1, 80
  %v348 = vld [vmem:[%s347] sm:$0xf]
  %v349 = vld [vmem:[%s347 + $0x4] sm:$0xf]
  %v350 = vld [vmem:[%s347 + $0x8] sm:$0xf]
  %v351 = vld [vmem:[%s347 + $0xc] sm:$0xf]
  %v352 = vld [vmem:[%s347 + $0x10] sm:$0xf]
  %v353 = vld [vmem:[%s347 + $0x14] sm:$0xf]
  %v354 = vld [vmem:[%s347 + $0x18] sm:$0xf]
  %v355 = vld [vmem:[%s347 + $0x1c] sm:$0xf]
  %v356 = vld [vmem:[%s347 + $0x20] sm:$0xf]
  %v357 = vld [vmem:[%s347 + $0x24] sm:$0xf]
  %v359 = vunpack.c.l.b16 %v346
  %v360 = vpack.c.b16 %v190, %v359
  %v361 = vrot.slane %v360, 1
  %v372 = vunpack.c.l.b16 %v348
  %v373 = vunpack.c.l.b16 %v349
  %v374 = vunpack.c.l.b16 %v350
  %v375 = vunpack.c.l.b16 %v351
  %v376 = vunpack.c.l.b16 %v352
  %v377 = vunpack.c.l.b16 %v353
  %v378 = vunpack.c.l.b16 %v354
  %v379 = vunpack.c.l.b16 %v355
  %v380 = vunpack.c.l.b16 %v356
  %v381 = vunpack.c.l.b16 %v357
  %v382 = vpack.c.b16 %v373, %v372
  %v383 = vpack.c.b16 %v375, %v374
  %v384 = vpack.c.b16 %v377, %v376
  %v385 = vpack.c.b16 %v379, %v378
  %v386 = vpack.c.b16 %v381, %v380
  %v393 = vsel %vm229, %v361, 0
  %395 = vmatprep.subr.bf16.mxu0 0
  %396 = vmatpush1.bf16.msra.mxu0 0
  %397 = vmatprep.subr.bf16.mxu0 0
  %398 = vmatpush1.bf16.msra.mxu0 0
  %399 = vmatprep.subr.bf16.mxu0 0
  %400 = vmatpush1.bf16.msra.mxu0 0
  %401 = vmatprep.subr.bf16.mxu0 0
  %402 = vmatpush1.bf16.msra.mxu0 %v386
  %403 = vmatprep.subr.bf16.mxu0 0
  %404 = vmatpush1.bf16.msra.mxu0 %v385
  %405 = vmatprep.subr.bf16.mxu0 0
  %406 = vmatpush1.bf16.msra.mxu0 %v384
  %407 = vmatprep.subr.bf16.mxu0 0
  %408 = vmatpush1.bf16.msra.mxu0 %v383
  %409 = vmatprep.subr.bf16.mxu0 0
  %410 = vmatpush1.bf16.msra.mxu0 %v382
  %411 = vmatprep.subr.bf16.mxu0 0
  %412 = vmatpush2.bf16.msra.mxu0 0
  %413 = vmatprep.subr.bf16.mxu0 0
  %414 = vmatpush2.bf16.msra.mxu0 0
  %415 = vmatprep.subr.bf16.mxu0 0
  %416 = vmatpush2.bf16.msra.mxu0 0
  %417 = vmatprep.subr.bf16.mxu0 0
  %418 = vmatpush2.bf16.msra.mxu0 0
  %419 = vmatprep.subr.bf16.mxu0 0
  %420 = vmatpush2.bf16.msra.mxu0 0
  %421 = vmatprep.subr.bf16.mxu0 0
  %422 = vmatpush2.bf16.msra.mxu0 0
  %423 = vmatprep.subr.bf16.mxu0 0
  %424 = vmatpush2.bf16.msra.mxu0 0
  %425 = vmatprep.subr.bf16.mxu0 0
  %426 = vmatpush2.bf16.msra.mxu0 0
  %427 = vmatprep.mubr.bf16.mxu0 0
  %428 = vmatmul.mubr.bf16.gmra.mxu0 %v393
  %v429 = vpop.f32.mrf.mxu0
  %v430 = vadd.f32 0.0, %v429
  %v431 = vpop.f32.mrf.mxu0
  %v432 = vpop.f32.mrf.mxu0
  %v433 = vpop.f32.mrf.mxu0
  %434 = vdwg.mxu0
  %v435 = vadd.f32 %v341, %v430
  %v436 = vld [vmem:[%s2] sm:$0x1]
  %v438 = vlaneseq
  %v439 = vshrl.u32 %v438, 7
  %v440 = vsub.s32 0, %v439
  %v441 = vrot.slane %v436, %v440
  %v443 = vadd.f32 %v435, %v441
  %v444 = vpack.c.bf16 %v443, %v443
  %445 = vst [vmem:[%s3] sm:$0xf] %v444
  %v446 = vrot.slane %v443, 4
  %v447 = vadd.f32 %v443, %v446
  %v448 = vrot.slane %v447, 2
  %v449 = vadd.f32 %v447, %v448
  %v450 = vrot.slane %v449, 1
  %v451 = vadd.f32 %v449, %v450
  %452 = vst [vmem:[%s4] sm:$0x1] %v451
  %v453 = vmul.f32 %v443, %v443
  %v454 = vrot.slane %v453, 4
  %v455 = vadd.f32 %v453, %v454
  %v456 = vrot.slane %v455, 2
  %v457 = vadd.f32 %v455, %v456
  %v458 = vrot.slane %v457, 1
  %v459 = vadd.f32 %v457, %v458
  %460 = vst [vmem:[%s5] sm:$0x1] %v459
  // Predicated region
  $region14: #{down_forward.3} parent=0 // pred_check
    _
  $region15: #{down_forward.3} parent=0 // pred_check_branch
    %462 = sbr.rel (0) target = $region17
  $region16: #{down_forward.3} parent=0 // pred_region
    _
  $region17: #{down_forward.3} parent=0 // pred_fallthru
    _
  // Predicated region
  $region18: #{down_forward.3} parent=0 // pred_check
    _
  $region19: #{down_forward.3} parent=0 // pred_check_branch
    %464 = sbr.rel (0) target = $region21
  $region20: #{down_forward.3} parent=0 // pred_region
    _
  $region21: #{down_forward.3} parent=0 // pred_fallthru
    _
  // Predicated region
  $region22: #{down_forward.3} parent=0 // pred_check
    _
  $region23: #{down_forward.3} parent=0 // pred_check_branch
    %466 = sbr.rel (0) target = $region25
  $region24: #{down_forward.3} parent=0 // pred_region
    _
  $region25: #{down_forward.3} parent=0 // pred_fallthru
    _
  // Predicated region
  $region26: #{down_forward.3} parent=0 // pred_check
    _
  $region27: #{down_forward.3} parent=0 // pred_check_branch
    %468 = sbr.rel (0) target = $region29
  $region28: #{down_forward.3} parent=0 // pred_region
    _
  $region29: #{down_forward.3} parent=0 // pred_fallthru
    _
  // Predicated region
  $region30: #{down_forward.3} parent=0 // pred_check
    _
  $region31: #{down_forward.3} parent=0 // pred_check_branch
    %470 = sbr.rel (0) target = $region33
  $region32: #{down_forward.3} parent=0 // pred_region
    _
  $region33: #{down_forward.3} parent=0 // pred_fallthru
    _
  // Predicated region
  $region34: #{down_forward.3} parent=0 // pred_check
    _
  $region35: #{down_forward.3} parent=0 // pred_check_branch
    %472 = sbr.rel (0) target = $region37
  $region36: #{down_forward.3} parent=0 // pred_region
    _
  $region37: #{down_forward.3} parent=0 // pred_fallthru
    _

// kernel: down_forward.4
$region0: #{down_forward.4}
  #allocation0 [shape = 'u32[]', space=smem, size = 0x4, offset = 0x4, fixed_abs, tag = 'smem constant byte address 0x4 - core index']
  #allocation1 [shape = 'u32[144,128]{1,0:T(1,128)}', space=vmem, size = 0x12000, scoped, tag = 'internal scratch']
  #allocation2 [shape = 'bf16[10,160]{1,0:T(8,128)(2,1)}', space=vmem, size = 0x2000, scoped, tag = 'scratch operand']
  %s0 = inlined_call_operand.vmem [shape: bf16[1,8,128], index: 0, kind: input, shape index: {}]
  %s1 = inlined_call_operand.vmem [shape: f32[1,128], index: 1, kind: input, shape index: {}]
  %s2 = inlined_call_operand.vmem [shape: f32[1,128], index: 2, kind: input, shape index: {}]
  %s3 = inlined_call_operand.vmem [shape: bf16[3,160,128], index: 3, kind: input, shape index: {}]
  %s4 = inlined_call_operand.vmem [shape: f32[1,128], index: 4, kind: input, shape index: {}]
  %s5 = inlined_call_operand.vmem [shape: bf16[1,8,128], index: 5, kind: output, shape index: {0}]
  %s6 = inlined_call_operand.vmem [shape: f32[1,1,128], index: 6, kind: output, shape index: {1}]
  %s7 = inlined_call_operand.vmem [shape: f32[1,1,128], index: 7, kind: output, shape index: {2}]
  %8 = xla_tuple %s5, %s6, %s7
  %s9 = sld [smem:[#allocation0]]
  $region46: #{down_forward.4} parent=0
    _
  %s11 = ssub.s32 1, %s9
  %s12 = scalar_select 0, %s11, %s9
  // Predicated region
  $region2: #{down_forward.4} parent=0 // pred_check
    _
  $region3: #{down_forward.4} parent=0 // pred_check_branch
    %14 = sbr.rel (0) target = $region5
  $region4: #{down_forward.4} parent=0 // pred_region
    _
  $region5: #{down_forward.4} parent=0 // pred_fallthru
    _
  // Predicated region
  $region6: #{down_forward.4} parent=0 // pred_check
    _
  $region7: #{down_forward.4} parent=0 // pred_check_branch
    %16 = sbr.rel (0) target = $region9
  $region8: #{down_forward.4} parent=0 // pred_region
    _
  $region9: #{down_forward.4} parent=0 // pred_fallthru
    _
  // Predicated region
  $region10: #{down_forward.4} parent=0 // pred_check
    _
  $region11: #{down_forward.4} parent=0 // pred_check_branch
    %18 = sbr.rel (0) target = $region13
  $region12: #{down_forward.4} parent=0 // pred_region
    _
  $region13: #{down_forward.4} parent=0 // pred_fallthru
    _
  // Predicated region
  $region14: #{down_forward.4} parent=0 // pred_check
    _
  $region15: #{down_forward.4} parent=0 // pred_check_branch
    %20 = sbr.rel (0) target = $region17
  $region16: #{down_forward.4} parent=0 // pred_region
    _
  $region17: #{down_forward.4} parent=0 // pred_fallthru
    _
  // Predicated region
  $region18: #{down_forward.4} parent=0 // pred_check
    _
  $region19: #{down_forward.4} parent=0 // pred_check_branch
    %22 = sbr.rel (0) target = $region21
  $region20: #{down_forward.4} parent=0 // pred_region
    _
  $region21: #{down_forward.4} parent=0 // pred_fallthru
    _
  %vm24 = vcmask 1043456
  %vm25 = vcmask 261124
  %vm26 = vmor %vm25, %vm24
  %27 = vst.msk [vmem:[#allocation2] sm:$0xff] %vm26, 0
  %vm28 = vcmask 1040384
  %vm29 = vcmask 258052
  %vm30 = vmor %vm29, %vm28
  %31 = vst.msk [vmem:[#allocation2 + $0x8] sm:$0x11] %vm30, 0
  %v32 = vld [vmem:[%s0] sm:$0xf]
  %v33 = vunpack.c.l.bf16 %v32
  %v34 = vld [vmem:[%s1] sm:$0x1]
  %v36 = vlaneseq
  %v37 = vshrl.u32 %v36, 7
  %v38 = vsub.s32 0, %v37
  %v39 = vrot.slane %v34, %v38
  %v41 = vmul.f32 %v33, %v39
  %v42 = vld [vmem:[%s2] sm:$0x1]
  %v44 = vlaneseq
  %v45 = vshrl.u32 %v44, 7
  %v46 = vsub.s32 0, %v45
  %v47 = vrot.slane %v42, %v46
  %v49 = vadd.f32 %v41, %v47
  %v50 = vmax.f32 %v49, 0.0
  %v51 = vpack.c.bf16 %v50, %v50
  %v53 = vunpack.c.l.b16 %v51
  %v54 = vpack.c.b16 %v53, %v53
  %v56 = vshrl.u32 %v54, 16
  %v58 = vrot.slane %v56, 7
  %v59 = vshll.u32 %v54, 16
  %v61 = vor.u32 %v58, %v59
  %v62 = vrot.slane %v58, 4
  %63 = vrot.lane.b32.xlu0 %v61, 8
  %v64 = vpop.permute.xlu0 %63
  %65 = vrot.lane.b32.xlu0 %v62, 8
  %v66 = vpop.permute.xlu0 %65
  %vm69 = vcmask 584768
  %vm70 = vsmask.f32 7938
  %vm71 = vmand %vm69, %vm70
  %v72 = vld [vmem:[#allocation2] sm:$0xf]
  %v73 = vsel %vm71, %v64, %v72
  %74 = vst [vmem:[#allocation2] sm:$0xf] %v73
  %vm75 = vcmask 581696
  %vm76 = vsmask.f32 256
  %vm77 = vmand %vm75, %vm76
  %v78 = vld [vmem:[#allocation2 + $0x8] sm:$0x1]
  %v79 = vsel %vm77, %v66, %v78
  %80 = vst [vmem:[#allocation2 + $0x8] sm:$0x1] %v79
  %81 = vrot.lane.b32.xlu0 %v61, 24
  %v82 = vpop.permute.xlu0 %81
  %83 = vrot.lane.b32.xlu0 %v62, 24
  %v84 = vpop.permute.xlu0 %83
  %v85 = vrot.slane %v82, 4
  %v86 = vrot.slane %v84, 4
  %vm87 = vcmask 195584
  %v88 = vsel %vm87, %v85, %v82
  %v89 = vsel %vm87, %v86, %v84
  %vm92 = vcmask 1044160
  %vm93 = vmand %vm92, %vm70
  %vm94 = vcmask 195588
  %vm95 = vsmask.f32 7954
  %vm96 = vmand %vm94, %vm95
  %vm97 = vmor %vm96, %vm93
  %v98 = vld [vmem:[#allocation2] sm:$0xff]
  %v99 = vsel %vm97, %v88, %v98
  %100 = vst [vmem:[#allocation2] sm:$0xff] %v99
  %vm101 = vcmask 1041088
  %vm102 = vmand %vm101, %vm76
  %vm103 = vcmask 192516
  %vm104 = vsmask.f32 4352
  %vm105 = vmand %vm103, %vm104
  %vm106 = vmor %vm105, %vm102
  %v107 = vld [vmem:[#allocation2 + $0x8] sm:$0x11]
  %v108 = vsel %vm106, %v89, %v107
  %109 = vst [vmem:[#allocation2 + $0x8] sm:$0x11] %v108
  %v110 = vld [vmem:[#allocation2] sm:$0xff]
  %v111 = vld [vmem:[%s3] sm:$0xf]
  %v112 = vld [vmem:[%s3 + $0x4] sm:$0xf]
  %v113 = vld [vmem:[%s3 + $0x8] sm:$0xf]
  %v114 = vld [vmem:[%s3 + $0xc] sm:$0xf]
  %v115 = vld [vmem:[%s3 + $0x10] sm:$0xf]
  %v116 = vld [vmem:[%s3 + $0x14] sm:$0xf]
  %v117 = vld [vmem:[%s3 + $0x18] sm:$0xf]
  %v118 = vld [vmem:[%s3 + $0x1c] sm:$0xf]
  %v119 = vld [vmem:[%s3 + $0x20] sm:$0xf]
  %v120 = vld [vmem:[%s3 + $0x24] sm:$0xf]
  %v121 = vld [vmem:[%s3 + $0x28] sm:$0xf]
  %v122 = vld [vmem:[%s3 + $0x2c] sm:$0xf]
  %v123 = vld [vmem:[%s3 + $0x30] sm:$0xf]
  %v124 = vld [vmem:[%s3 + $0x34] sm:$0xf]
  %v125 = vld [vmem:[%s3 + $0x38] sm:$0xf]
  %v126 = vld [vmem:[%s3 + $0x3c] sm:$0xf]
  %v127 = vld [vmem:[%s3 + $0x40] sm:$0xf]
  %v128 = vld [vmem:[%s3 + $0x44] sm:$0xf]
  %v129 = vld [vmem:[%s3 + $0x48] sm:$0xf]
  %v130 = vld [vmem:[%s3 + $0x4c] sm:$0xf]
  %v131 = vld [vmem:[#allocation2 + $0x8] sm:$0x11]
  %s132 = scalar_lea.vmem %s3, 80
  %v133 = vld [vmem:[%s132] sm:$0xf]
  %v134 = vld [vmem:[%s132 + $0x4] sm:$0xf]
  %v135 = vld [vmem:[%s132 + $0x8] sm:$0xf]
  %v136 = vld [vmem:[%s132 + $0xc] sm:$0xf]
  %v137 = vld [vmem:[%s132 + $0x10] sm:$0xf]
  %v138 = vld [vmem:[%s132 + $0x14] sm:$0xf]
  %v139 = vld [vmem:[%s132 + $0x18] sm:$0xf]
  %v140 = vld [vmem:[%s132 + $0x1c] sm:$0xf]
  %v141 = vld [vmem:[%s132 + $0x20] sm:$0xf]
  %v142 = vld [vmem:[%s132 + $0x24] sm:$0xf]
  %v143 = vld [vmem:[%s132 + $0x28] sm:$0xf]
  %v144 = vld [vmem:[%s132 + $0x2c] sm:$0xf]
  %v145 = vld [vmem:[%s132 + $0x30] sm:$0xf]
  %v146 = vld [vmem:[%s132 + $0x34] sm:$0xf]
  %v147 = vld [vmem:[%s132 + $0x38] sm:$0xf]
  %v148 = vld [vmem:[%s132 + $0x3c] sm:$0xf]
  %v149 = vld [vmem:[%s132 + $0x40] sm:$0xf]
  %v150 = vld [vmem:[%s132 + $0x44] sm:$0xf]
  %v151 = vld [vmem:[%s132 + $0x48] sm:$0xf]
  %v152 = vld [vmem:[%s132 + $0x4c] sm:$0xf]
  %v155 = vunpack.c.l.b16 %v110
  %v156 = vunpack.c.h.b16 %v110
  %v157 = vunpack.c.l.b16 %v131
  %v158 = vunpack.c.h.b16 %v131
  %v159 = vpack.c.b16 %v157, %v155
  %v160 = vpack.c.b16 %v158, %v156
  %v162 = vshrl.u32 %v159, 16
  %v164 = vshll.u32 %v159, 16
  %v166 = vrot.slane %v164, 1
  %v167 = vor.u32 %v162, %v166
  %v169 = vshrl.u32 %v160, 16
  %v171 = vshll.u32 %v160, 16
  %v173 = vrot.slane %v171, 1
  %v174 = vor.u32 %v169, %v173
  %v196 = vunpack.c.l.b16 %v133
  %v197 = vunpack.c.l.b16 %v134
  %v198 = vunpack.c.l.b16 %v135
  %v199 = vunpack.c.l.b16 %v136
  %v200 = vunpack.c.l.b16 %v137
  %v201 = vunpack.c.l.b16 %v138
  %v202 = vunpack.c.l.b16 %v139
  %v203 = vunpack.c.l.b16 %v140
  %v204 = vunpack.c.l.b16 %v141
  %v205 = vunpack.c.l.b16 %v142
  %v206 = vunpack.c.l.b16 %v143
  %v207 = vunpack.c.l.b16 %v144
  %v208 = vunpack.c.l.b16 %v145
  %v209 = vunpack.c.l.b16 %v146
  %v210 = vunpack.c.l.b16 %v147
  %v211 = vunpack.c.l.b16 %v148
  %v212 = vunpack.c.l.b16 %v149
  %v213 = vunpack.c.l.b16 %v150
  %v214 = vunpack.c.l.b16 %v151
  %v215 = vunpack.c.l.b16 %v152
  %v216 = vpack.c.b16 %v197, %v196
  %v217 = vpack.c.b16 %v199, %v198
  %v218 = vpack.c.b16 %v201, %v200
  %v219 = vpack.c.b16 %v203, %v202
  %v220 = vpack.c.b16 %v205, %v204
  %v221 = vpack.c.b16 %v207, %v206
  %v222 = vpack.c.b16 %v209, %v208
  %v223 = vpack.c.b16 %v211, %v210
  %v224 = vpack.c.b16 %v213, %v212
  %v225 = vpack.c.b16 %v215, %v214
  %vm236 = vcmask 261120
  %v238 = vsel %vm236, %v174, 0
  %240 = vmatprep.subr.bf16.mxu0 0
  %241 = vmatpush1.bf16.msra.mxu0 %v223
  %242 = vmatprep.subr.bf16.mxu0 0
  %243 = vmatpush1.bf16.msra.mxu0 %v222
  %244 = vmatprep.subr.bf16.mxu0 0
  %245 = vmatpush1.bf16.msra.mxu0 %v221
  %246 = vmatprep.subr.bf16.mxu0 0
  %247 = vmatpush1.bf16.msra.mxu0 %v220
  %248 = vmatprep.subr.bf16.mxu0 0
  %249 = vmatpush1.bf16.msra.mxu0 %v219
  %250 = vmatprep.subr.bf16.mxu0 0
  %251 = vmatpush1.bf16.msra.mxu0 %v218
  %252 = vmatprep.subr.bf16.mxu0 0
  %253 = vmatpush1.bf16.msra.mxu0 %v217
  %254 = vmatprep.subr.bf16.mxu0 0
  %255 = vmatpush1.bf16.msra.mxu0 %v216
  %256 = vmatprep.subr.bf16.mxu0 0
  %257 = vmatpush2.bf16.msra.mxu0 0
  %258 = vmatprep.subr.bf16.mxu0 0
  %259 = vmatpush2.bf16.msra.mxu0 0
  %260 = vmatprep.subr.bf16.mxu0 0
  %261 = vmatpush2.bf16.msra.mxu0 0
  %262 = vmatprep.subr.bf16.mxu0 0
  %263 = vmatpush2.bf16.msra.mxu0 0
  %264 = vmatprep.subr.bf16.mxu0 0
  %265 = vmatpush2.bf16.msra.mxu0 0
  %266 = vmatprep.subr.bf16.mxu0 0
  %267 = vmatpush2.bf16.msra.mxu0 0
  %268 = vmatprep.subr.bf16.mxu0 0
  %269 = vmatpush2.bf16.msra.mxu0 %v225
  %270 = vmatprep.subr.bf16.mxu0 0
  %271 = vmatpush2.bf16.msra.mxu0 %v224
  %272 = vmatprep.mubr.bf16.mxu0 %v238
  %273 = vmatmul.mubr.bf16.gmra.mxu0 %v167
  %v274 = vpop.f32.mrf.mxu0
  %v275 = vadd.f32 0.0, %v274
  %v276 = vpop.f32.mrf.mxu0
  %v277 = vpop.f32.mrf.mxu0
  %v278 = vpop.f32.mrf.mxu0
  %279 = vdwg.mxu0
  %v280 = vpack.c.b16 %v155, %v155
  %v281 = vpack.c.b16 %v156, %v156
  %v303 = vunpack.c.l.b16 %v111
  %v304 = vunpack.c.l.b16 %v112
  %v305 = vunpack.c.l.b16 %v113
  %v306 = vunpack.c.l.b16 %v114
  %v307 = vunpack.c.l.b16 %v115
  %v308 = vunpack.c.l.b16 %v116
  %v309 = vunpack.c.l.b16 %v117
  %v310 = vunpack.c.l.b16 %v118
  %v311 = vunpack.c.l.b16 %v119
  %v312 = vunpack.c.l.b16 %v120
  %v313 = vunpack.c.l.b16 %v121
  %v314 = vunpack.c.l.b16 %v122
  %v315 = vunpack.c.l.b16 %v123
  %v316 = vunpack.c.l.b16 %v124
  %v317 = vunpack.c.l.b16 %v125
  %v318 = vunpack.c.l.b16 %v126
  %v319 = vunpack.c.l.b16 %v127
  %v320 = vunpack.c.l.b16 %v128
  %v321 = vunpack.c.l.b16 %v129
  %v322 = vunpack.c.l.b16 %v130
  %v323 = vpack.c.b16 %v304, %v303
  %v324 = vpack.c.b16 %v306, %v305
  %v325 = vpack.c.b16 %v308, %v307
  %v326 = vpack.c.b16 %v310, %v309
  %v327 = vpack.c.b16 %v312, %v311
  %v328 = vpack.c.b16 %v314, %v313
  %v329 = vpack.c.b16 %v316, %v315
  %v330 = vpack.c.b16 %v318, %v317
  %v331 = vpack.c.b16 %v320, %v319
  %v332 = vpack.c.b16 %v322, %v321
  %v344 = vsel %vm236, %v281, 0
  %346 = vmatprep.subr.bf16.mxu0 0
  %347 = vmatpush1.bf16.msra.mxu0 %v330
  %348 = vmatprep.subr.bf16.mxu0 0
  %349 = vmatpush1.bf16.msra.mxu0 %v329
  %350 = vmatprep.subr.bf16.mxu0 0
  %351 = vmatpush1.bf16.msra.mxu0 %v328
  %352 = vmatprep.subr.bf16.mxu0 0
  %353 = vmatpush1.bf16.msra.mxu0 %v327
  %354 = vmatprep.subr.bf16.mxu0 0
  %355 = vmatpush1.bf16.msra.mxu0 %v326
  %356 = vmatprep.subr.bf16.mxu0 0
  %357 = vmatpush1.bf16.msra.mxu0 %v325
  %358 = vmatprep.subr.bf16.mxu0 0
  %359 = vmatpush1.bf16.msra.mxu0 %v324
  %360 = vmatprep.subr.bf16.mxu0 0
  %361 = vmatpush1.bf16.msra.mxu0 %v323
  %362 = vmatprep.subr.bf16.mxu0 0
  %363 = vmatpush2.bf16.msra.mxu0 0
  %364 = vmatprep.subr.bf16.mxu0 0
  %365 = vmatpush2.bf16.msra.mxu0 0
  %366 = vmatprep.subr.bf16.mxu0 0
  %367 = vmatpush2.bf16.msra.mxu0 0
  %368 = vmatprep.subr.bf16.mxu0 0
  %369 = vmatpush2.bf16.msra.mxu0 0
  %370 = vmatprep.subr.bf16.mxu0 0
  %371 = vmatpush2.bf16.msra.mxu0 0
  %372 = vmatprep.subr.bf16.mxu0 0
  %373 = vmatpush2.bf16.msra.mxu0 0
  %374 = vmatprep.subr.bf16.mxu0 0
  %375 = vmatpush2.bf16.msra.mxu0 %v332
  %376 = vmatprep.subr.bf16.mxu0 0
  %377 = vmatpush2.bf16.msra.mxu0 %v331
  %378 = vmatprep.mubr.bf16.mxu0 %v344
  %379 = vmatmul.mubr.bf16.gmra.mxu0 %v280
  %v380 = vpop.f32.mrf.mxu0
  %v381 = vadd.f32 %v275, %v380
  %v382 = vpop.f32.mrf.mxu0
  %v383 = vpop.f32.mrf.mxu0
  %v384 = vpop.f32.mrf.mxu0
  %385 = vdwg.mxu0
  %v386 = vld [vmem:[#allocation2] sm:$0xee]
  %s387 = scalar_lea.vmem %s3, 160
  %v388 = vld [vmem:[%s387] sm:$0xf]
  %v389 = vld [vmem:[%s387 + $0x4] sm:$0xf]
  %v390 = vld [vmem:[%s387 + $0x8] sm:$0xf]
  %v391 = vld [vmem:[%s387 + $0xc] sm:$0xf]
  %v392 = vld [vmem:[%s387 + $0x10] sm:$0xf]
  %v393 = vld [vmem:[%s387 + $0x14] sm:$0xf]
  %v394 = vld [vmem:[%s387 + $0x18] sm:$0xf]
  %v395 = vld [vmem:[%s387 + $0x1c] sm:$0xf]
  %v396 = vld [vmem:[%s387 + $0x20] sm:$0xf]
  %v397 = vld [vmem:[%s387 + $0x24] sm:$0xf]
  %v398 = vld [vmem:[%s387 + $0x28] sm:$0xf]
  %v399 = vld [vmem:[%s387 + $0x2c] sm:$0xf]
  %v400 = vld [vmem:[%s387 + $0x30] sm:$0xf]
  %v401 = vld [vmem:[%s387 + $0x34] sm:$0xf]
  %v402 = vld [vmem:[%s387 + $0x38] sm:$0xf]
  %v403 = vld [vmem:[%s387 + $0x3c] sm:$0xf]
  %v404 = vld [vmem:[%s387 + $0x40] sm:$0xf]
  %v405 = vld [vmem:[%s387 + $0x44] sm:$0xf]
  %v406 = vld [vmem:[%s387 + $0x48] sm:$0xf]
  %v407 = vld [vmem:[%s387 + $0x4c] sm:$0xf]
  %v409 = vunpack.c.l.b16 %v386
  %v410 = vunpack.c.h.b16 %v386
  %v411 = vpack.c.b16 %v157, %v409
  %v412 = vpack.c.b16 %v158, %v410
  %v413 = vrot.slane %v411, 1
  %v414 = vrot.slane %v412, 1
  %v436 = vunpack.c.l.b16 %v388
  %v437 = vunpack.c.l.b16 %v389
  %v438 = vunpack.c.l.b16 %v390
  %v439 = vunpack.c.l.b16 %v391
  %v440 = vunpack.c.l.b16 %v392
  %v441 = vunpack.c.l.b16 %v393
  %v442 = vunpack.c.l.b16 %v394
  %v443 = vunpack.c.l.b16 %v395
  %v444 = vunpack.c.l.b16 %v396
  %v445 = vunpack.c.l.b16 %v397
  %v446 = vunpack.c.l.b16 %v398
  %v447 = vunpack.c.l.b16 %v399
  %v448 = vunpack.c.l.b16 %v400
  %v449 = vunpack.c.l.b16 %v401
  %v450 = vunpack.c.l.b16 %v402
  %v451 = vunpack.c.l.b16 %v403
  %v452 = vunpack.c.l.b16 %v404
  %v453 = vunpack.c.l.b16 %v405
  %v454 = vunpack.c.l.b16 %v406
  %v455 = vunpack.c.l.b16 %v407
  %v456 = vpack.c.b16 %v437, %v436
  %v457 = vpack.c.b16 %v439, %v438
  %v458 = vpack.c.b16 %v441, %v440
  %v459 = vpack.c.b16 %v443, %v442
  %v460 = vpack.c.b16 %v445, %v444
  %v461 = vpack.c.b16 %v447, %v446
  %v462 = vpack.c.b16 %v449, %v448
  %v463 = vpack.c.b16 %v451, %v450
  %v464 = vpack.c.b16 %v453, %v452
  %v465 = vpack.c.b16 %v455, %v454
  %v477 = vsel %vm236, %v414, 0
  %479 = vmatprep.subr.bf16.mxu0 0
  %480 = vmatpush1.bf16.msra.mxu0 %v463
  %481 = vmatprep.subr.bf16.mxu0 0
  %482 = vmatpush1.bf16.msra.mxu0 %v462
  %483 = vmatprep.subr.bf16.mxu0 0
  %484 = vmatpush1.bf16.msra.mxu0 %v461
  %485 = vmatprep.subr.bf16.mxu0 0
  %486 = vmatpush1.bf16.msra.mxu0 %v460
  %487 = vmatprep.subr.bf16.mxu0 0
  %488 = vmatpush1.bf16.msra.mxu0 %v459
  %489 = vmatprep.subr.bf16.mxu0 0
  %490 = vmatpush1.bf16.msra.mxu0 %v458
  %491 = vmatprep.subr.bf16.mxu0 0
  %492 = vmatpush1.bf16.msra.mxu0 %v457
  %493 = vmatprep.subr.bf16.mxu0 0
  %494 = vmatpush1.bf16.msra.mxu0 %v456
  %495 = vmatprep.subr.bf16.mxu0 0
  %496 = vmatpush2.bf16.msra.mxu0 0
  %497 = vmatprep.subr.bf16.mxu0 0
  %498 = vmatpush2.bf16.msra.mxu0 0
  %499 = vmatprep.subr.bf16.mxu0 0
  %500 = vmatpush2.bf16.msra.mxu0 0
  %501 = vmatprep.subr.bf16.mxu0 0
  %502 = vmatpush2.bf16.msra.mxu0 0
  %503 = vmatprep.subr.bf16.mxu0 0
  %504 = vmatpush2.bf16.msra.mxu0 0
  %505 = vmatprep.subr.bf16.mxu0 0
  %506 = vmatpush2.bf16.msra.mxu0 0
  %507 = vmatprep.subr.bf16.mxu0 0
  %508 = vmatpush2.bf16.msra.mxu0 %v465
  %509 = vmatprep.subr.bf16.mxu0 0
  %510 = vmatpush2.bf16.msra.mxu0 %v464
  %511 = vmatprep.mubr.bf16.mxu0 %v477
  %512 = vmatmul.mubr.bf16.gmra.mxu0 %v413
  %v513 = vpop.f32.mrf.mxu0
  %v514 = vadd.f32 0.0, %v513
  %v515 = vpop.f32.mrf.mxu0
  %v516 = vpop.f32.mrf.mxu0
  %v517 = vpop.f32.mrf.mxu0
  %518 = vdwg.mxu0
  %v519 = vadd.f32 %v381, %v514
  %v520 = vld [vmem:[%s4] sm:$0x1]
  %v522 = vlaneseq
  %v523 = vshrl.u32 %v522, 7
  %v524 = vsub.s32 0, %v523
  %v525 = vrot.slane %v520, %v524
  %v527 = vadd.f32 %v519, %v525
  %v528 = vpack.c.bf16 %v527, %v527
  %529 = vst [vmem:[%s5] sm:$0xf] %v528
  %v530 = vrot.slane %v527, 4
  %v531 = vadd.f32 %v527, %v530
  %v532 = vrot.slane %v531, 2
  %v533 = vadd.f32 %v531, %v532
  %v534 = vrot.slane %v533, 1
  %v535 = vadd.f32 %v533, %v534
  %536 = vst [vmem:[%s6] sm:$0x1] %v535
  %v537 = vmul.f32 %v527, %v527
  %v538 = vrot.slane %v537, 4
  %v539 = vadd.f32 %v537, %v538
  %v540 = vrot.slane %v539, 2
  %v541 = vadd.f32 %v539, %v540
  %v542 = vrot.slane %v541, 1
  %v543 = vadd.f32 %v541, %v542
  %544 = vst [vmem:[%s7] sm:$0x1] %v543
  // Predicated region
  $region22: #{down_forward.4} parent=0 // pred_check
    _
  $region23: #{down_forward.4} parent=0 // pred_check_branch
    %546 = sbr.rel (0) target = $region25
  $region24: #{down_forward.4} parent=0 // pred_region
    _
  $region25: #{down_forward.4} parent=0 // pred_fallthru
    _
  // Predicated region
  $region26: #{down_forward.4} parent=0 // pred_check
    _
  $region27: #{down_forward.4} parent=0 // pred_check_branch
    %548 = sbr.rel (0) target = $region29
  $region28: #{down_forward.4} parent=0 // pred_region
    _
  $region29: #{down_forward.4} parent=0 // pred_fallthru
    _
  // Predicated region
  $region30: #{down_forward.4} parent=0 // pred_check
    _
  $region31: #{down_forward.4} parent=0 // pred_check_branch
    %550 = sbr.rel (0) target = $region33
  $region32: #{down_forward.4} parent=0 // pred_region
    _
  $region33: #{down_forward.4} parent=0 // pred_fallthru
    _
  // Predicated region
  $region34: #{down_forward.4} parent=0 // pred_check
    _
  $region35: #{down_forward.4} parent=0 // pred_check_branch
    %552 = sbr.rel (0) target = $region37
  $region36: #{down_forward.4} parent=0 // pred_region
    _
  $region37: #{down_forward.4} parent=0 // pred_fallthru
    _
  // Predicated region
  $region38: #{down_forward.4} parent=0 // pred_check
    _
  $region39: #{down_forward.4} parent=0 // pred_check_branch
    %554 = sbr.rel (0) target = $region41
  $region40: #{down_forward.4} parent=0 // pred_region
    _
  $region41: #{down_forward.4} parent=0 // pred_fallthru
    _
  // Predicated region
  $region42: #{down_forward.4} parent=0 // pred_check
    _
  $region43: #{down_forward.4} parent=0 // pred_check_branch
    %556 = sbr.rel (0) target = $region45
  $region44: #{down_forward.4} parent=0 // pred_region
    _
  $region45: #{down_forward.4} parent=0 // pred_fallthru
    _

</llo_original>
